<compile_context>
chip_gen: v6e
topology: v6e:2x2x1
jax: 0.10.0
libtpu: 0.0.40
codegen_flags: <defaults>
</compile_context>

<pallas_src>
import functools

import jax
import jax.numpy as jnp
from jax.experimental import pallas as pl
from jax.experimental.pallas import tpu as pltpu

# Feature dimension of X_train (Adult/Income style tabular features).
IN_FEATURES = 14


def _sigmoid(x):
    return 1.0 / (1.0 + jnp.exp(-x))


def _round_up(n, m):
    return ((n + m - 1) // m) * m


def mlp_kernel(
    x_ref,                       # [TB, F]   bf16
    w1_ref, b1_ref,              # [F, 32]   bf16 / [1, 32] f32
    w2a_ref, w2b_ref, b2_ref,    # [32, 128] bf16 (x2) / [1, 128] f32
    w3_ref, b3_ref,              # [128, 64] bf16 / [1, 64] f32   (fc3_1 | fc3_2)
    w4_ref, b4_ref,              # [64, 16]  bf16 / [1, 16] f32
    w5t_ref, b5_ref,             # [1, 16]   f32  / [1, 1]  f32
    out_ref,                     # [TB, 1]   f32
):
    x = x_ref[...]                                                    # bf16 [TB, F]

    # --- fc1 (shared pre-activation for the relu and sigmoid branches) -----
    h1 = jnp.dot(x, w1_ref[...], preferred_element_type=jnp.float32) + b1_ref[...]
    x1 = jnp.maximum(h1, 0.0)                                         # relu(fc1(x))
    x2 = _sigmoid(h1)                                                 # sigmoid(fc1(x))

    # --- fc2 + relu: concat([x1, x2]) @ W2  ==  x1 @ W2a + x2 @ W2b --------
    h = (
        jnp.dot(x1.astype(jnp.bfloat16), w2a_ref[...], preferred_element_type=jnp.float32)
        + jnp.dot(x2.astype(jnp.bfloat16), w2b_ref[...], preferred_element_type=jnp.float32)
        + b2_ref[...]
    )
    h = jnp.maximum(h, 0.0)                                           # [TB, 128]

    # --- fused fc3_1 | fc3_2: one [TB,128] x [128,64] matmul ---------------
    h3 = jnp.dot(h.astype(jnp.bfloat16), w3_ref[...], preferred_element_type=jnp.float32)
    h3 = h3 + b3_ref[...]                                             # [TB, 64]
    lane = jax.lax.broadcasted_iota(jnp.int32, h3.shape, dimension=1)
    h = jnp.where(lane < 32, jnp.maximum(h3, 0.0), _sigmoid(h3))      # relu | sigmoid

    # --- fc4 + relu ---------------------------------------------------------
    h = jnp.dot(h.astype(jnp.bfloat16), w4_ref[...], preferred_element_type=jnp.float32)
    h = jnp.maximum(h + b4_ref[...], 0.0)                             # [TB, 16]

    # --- fc5 + sigmoid: N=1 matmul replaced by VPU multiply + lane reduce ---
    y = jnp.sum(h * w5t_ref[...], axis=-1, keepdims=True) + b5_ref[...]  # [TB, 1]
    out_ref[...] = _sigmoid(y)


def prepare_params(params):
    """Preprocess PyTorch-shaped params into the kernel's fused/bf16 layout."""
    w2 = params["w2"]                                   # [64, 128]
    w3 = jnp.concatenate([params["w31"], params["w32"]], axis=1)   # [128, 64]
    b3 = jnp.concatenate([params["b31"], params["b32"]], axis=1)   # [1, 64]
    return {
        "w1": params["w1"].astype(jnp.bfloat16),
        "b1": params["b1"].astype(jnp.float32),
        "w2a": w2[:32].astype(jnp.bfloat16),            # consumed by relu branch
        "w2b": w2[32:].astype(jnp.bfloat16),            # consumed by sigmoid branch
        "b2": params["b2"].astype(jnp.float32),
        "w3": w3.astype(jnp.bfloat16),
        "b3": b3.astype(jnp.float32),
        "w4": params["w4"].astype(jnp.bfloat16),
        "b4": params["b4"].astype(jnp.float32),
        "w5t": params["w5"].T.astype(jnp.float32),      # [1, 16] for VPU reduce
        "b5": params["b5"].astype(jnp.float32),
    }


def _resident_spec(shape):
    """Full-array block, same block for every grid step (stays VMEM-resident)."""
    rank = len(shape)
    return pl.BlockSpec(shape, lambda i, _r=rank: (0,) * _r)


@functools.partial(jax.jit, static_argnames=("tb",))
def mlp_forward(x, prep, *, tb=1024):
    """x: [B, IN_FEATURES] float32. prep: output of prepare_params()."""
    B, F = x.shape
    assert F == IN_FEATURES

    # Batch tile: multiple of 8 (sublane), capped by (padded) batch size.
    TB = min(tb, _round_up(B, 8))
    TB = _round_up(TB, 8)
    B_pad = _round_up(B, TB)
    if B_pad != B:
        x = jnp.pad(x, ((0, B_pad - B), (0, 0)))
    x = x.astype(jnp.bfloat16)

    operands = [
        x,
        prep["w1"], prep["b1"],
        prep["w2a"], prep["w2b"], prep["b2"],
        prep["w3"], prep["b3"],
        prep["w4"], prep["b4"],
        prep["w5t"], prep["b5"],
    ]

    in_specs = [pl.BlockSpec((TB, IN_FEATURES), lambda i: (i, 0))]   # x: tiled on batch
    in_specs += [_resident_spec(op.shape) for op in operands[1:]]    # weights: resident

    out = pl.pallas_call(
        mlp_kernel,
        out_shape=jax.ShapeDtypeStruct((B_pad, 1), jnp.float32),
        grid=(B_pad // TB,),
        in_specs=in_specs,
        out_specs=pl.BlockSpec((TB, 1), lambda i: (i, 0)),
        compiler_params=pltpu.CompilerParams(
            dimension_semantics=("parallel",),
        ),
    )(*operands)

    return out[:B]


def init_params(key):
    """Deterministic init matching the PyTorch module's layer shapes.

    Weights stored [in, out] (transpose of nn.Linear), biases [1, out].
    """
    def linear(key, fan_in, fan_out):
        kw, kb = jax.random.split(key)
        bound = 1.0 / jnp.sqrt(fan_in)
        w = jax.random.uniform(kw, (fan_in, fan_out), jnp.float32, -bound, bound)
        b = jax.random.uniform(kb, (1, fan_out), jnp.float32, -bound, bound)
        return w, b

    keys = jax.random.split(key, 6)
    w1, b1 = linear(keys[0], IN_FEATURES, 32)
    w2, b2 = linear(keys[1], 64, 128)
    w31, b31 = linear(keys[2], 128, 32)
    w32, b32 = linear(keys[3], 128, 32)
    w4, b4 = linear(keys[4], 64, 16)
    w5, b5 = linear(keys[5], 16, 1)
    return {
        "w1": w1, "b1": b1,
        "w2": w2, "b2": b2,
        "w31": w31, "b31": b31,
        "w32": w32, "b32": b32,
        "w4": w4, "b4": b4,
        "w5": w5, "b5": b5,
    }


def mlp_reference_f32(x, p):
    """Plain-JAX f32 reference of the original PyTorch forward."""
    h1 = x @ p["w1"] + p["b1"]
    h = jnp.concatenate([jnp.maximum(h1, 0.0), jax.nn.sigmoid(h1)], axis=1)
    h = jnp.maximum(h @ p["w2"] + p["b2"], 0.0)
    a = jnp.maximum(h @ p["w31"] + p["b31"], 0.0)
    b = jax.nn.sigmoid(h @ p["w32"] + p["b32"])
    h = jnp.concatenate([a, b], axis=1)
    h = jnp.maximum(h @ p["w4"] + p["b4"], 0.0)
    return jax.nn.sigmoid(h @ p["w5"] + p["b5"])


def mlp_reference_prepared(x, prep):
    """Plain-JAX reference using the exact bf16/fused operands the kernel sees."""
    xb = x.astype(jnp.bfloat16)
    h1 = jnp.dot(xb, prep["w1"], preferred_element_type=jnp.float32) + prep["b1"]
    x1 = jnp.maximum(h1, 0.0)
    x2 = _sigmoid(h1)
    h = (
        jnp.dot(x1.astype(jnp.bfloat16), prep["w2a"], preferred_element_type=jnp.float32)
        + jnp.dot(x2.astype(jnp.bfloat16), prep["w2b"], preferred_element_type=jnp.float32)
        + prep["b2"]
    )
    h = jnp.maximum(h, 0.0)
    h3 = jnp.dot(h.astype(jnp.bfloat16), prep["w3"], preferred_element_type=jnp.float32)
    h3 = h3 + prep["b3"]
    lane = jax.lax.broadcasted_iota(jnp.int32, h3.shape, dimension=1)
    h = jnp.where(lane < 32, jnp.maximum(h3, 0.0), _sigmoid(h3))
    h = jnp.dot(h.astype(jnp.bfloat16), prep["w4"], preferred_element_type=jnp.float32)
    h = jnp.maximum(h + prep["b4"], 0.0)
    y = jnp.sum(h * prep["w5t"], axis=-1, keepdims=True) + prep["b5"]
    return _sigmoid(y)


if __name__ == "__main__":
    key = jax.random.PRNGKey(0)
    kx, kp = jax.random.split(key)

    B = 300  # deliberately not a multiple of the tile to exercise padding
    x = jax.random.normal(kx, (B, IN_FEATURES), dtype=jnp.float32)
    params = init_params(kp)
    prep = prepare_params(params)

    out = mlp_forward(x, prep)
    out = jax.block_until_ready(out)
    assert out.shape == (B, 1)
    assert not jnp.any(jnp.isnan(out))

    # Exact-math check against a plain-JAX model using the same bf16 operands.
    ref_matched = mlp_reference_prepared(x, prep)
    assert jnp.allclose(out, ref_matched, atol=1e-4, rtol=1e-4)

    # Fidelity check against the original full-f32 module semantics
    # (bf16 weight/activation rounding accounts for the looser tolerance).
    ref_f32 = mlp_reference_f32(x, params)
    assert jnp.allclose(out, ref_f32, atol=5e-2)

    print("KERNEL_OK")
</pallas_src>

<mosaic_0001>
module attributes {stable_mosaic.version = 11 : i64} {
  func.func @mlp_kernel(%arg0: i32, %arg1: memref<304x14xbf16, #tpu.memory_space<vmem>>, %arg2: memref<14x32xbf16, #tpu.memory_space<vmem>>, %arg3: memref<1x32xf32, #tpu.memory_space<vmem>>, %arg4: memref<32x128xbf16, #tpu.memory_space<vmem>>, %arg5: memref<32x128xbf16, #tpu.memory_space<vmem>>, %arg6: memref<1x128xf32, #tpu.memory_space<vmem>>, %arg7: memref<128x64xbf16, #tpu.memory_space<vmem>>, %arg8: memref<1x64xf32, #tpu.memory_space<vmem>>, %arg9: memref<64x16xbf16, #tpu.memory_space<vmem>>, %arg10: memref<1x16xf32, #tpu.memory_space<vmem>>, %arg11: memref<1x16xf32, #tpu.memory_space<vmem>>, %arg12: memref<1x1xf32, #tpu.memory_space<vmem>>, %arg13: memref<304x1xf32, #tpu.memory_space<vmem>>) attributes {dimension_semantics = [#tpu.dimension_semantics<parallel>], iteration_bounds = array<i64: 1>, scalar_prefetch = 0 : i64, scratch_operands = 0 : i64, tpu.core_type = #tpu.core_type<tc>, window_params = [{transform_indices = @transform_0, window_bounds = array<i64: 304, 14>}, {pipeline_mode = #tpu.pipeline_mode<synchronous>, transform_indices = @transform_1, window_bounds = array<i64: 14, 32>}, {pipeline_mode = #tpu.pipeline_mode<synchronous>, transform_indices = @transform_2, window_bounds = array<i64: 1, 32>}, {pipeline_mode = #tpu.pipeline_mode<synchronous>, transform_indices = @transform_3, window_bounds = array<i64: 32, 128>}, {pipeline_mode = #tpu.pipeline_mode<synchronous>, transform_indices = @transform_4, window_bounds = array<i64: 32, 128>}, {pipeline_mode = #tpu.pipeline_mode<synchronous>, transform_indices = @transform_5, window_bounds = array<i64: 1, 128>}, {pipeline_mode = #tpu.pipeline_mode<synchronous>, transform_indices = @transform_6, window_bounds = array<i64: 128, 64>}, {pipeline_mode = #tpu.pipeline_mode<synchronous>, transform_indices = @transform_7, window_bounds = array<i64: 1, 64>}, {pipeline_mode = #tpu.pipeline_mode<synchronous>, transform_indices = @transform_8, window_bounds = array<i64: 64, 16>}, {pipeline_mode = #tpu.pipeline_mode<synchronous>, transform_indices = @transform_9, window_bounds = array<i64: 1, 16>}, {pipeline_mode = #tpu.pipeline_mode<synchronous>, transform_indices = @transform_10, window_bounds = array<i64: 1, 16>}, {pipeline_mode = #tpu.pipeline_mode<synchronous>, transform_indices = @transform_11, window_bounds = array<i64: 1, 1>}, {transform_indices = @transform_12, window_bounds = array<i64: 304, 1>}]} {
    %c0 = arith.constant 0 : index
    %c0_0 = arith.constant 0 : index
    %0 = vector.load %arg1[%c0, %c0_0] : memref<304x14xbf16, #tpu.memory_space<vmem>>, vector<304x14xbf16>
    %c0_1 = arith.constant 0 : index
    %c0_2 = arith.constant 0 : index
    %1 = vector.load %arg2[%c0_1, %c0_2] : memref<14x32xbf16, #tpu.memory_space<vmem>>, vector<14x32xbf16>
    %cst = arith.constant dense<0.000000e+00> : vector<304x32xf32>
    %2 = tpu.matmul %0, %1, %cst {dimension_numbers = #tpu.dot_dimension_numbers<[1], [0], [0], [1], [0, 0, 1, 1], [], []>} : vector<304x14xbf16>, vector<14x32xbf16>, vector<304x32xf32> -> vector<304x32xf32>
    %c0_3 = arith.constant 0 : index
    %c0_4 = arith.constant 0 : index
    %3 = vector.load %arg3[%c0_3, %c0_4] : memref<1x32xf32, #tpu.memory_space<vmem>>, vector<1x32xf32>
    %4 = vector.broadcast %3 : vector<1x32xf32> to vector<304x32xf32>
    %5 = arith.addf %2, %4 : vector<304x32xf32>
    %cst_5 = arith.constant 0.000000e+00 : f32
    %6 = vector.broadcast %cst_5 : f32 to vector<304x32xf32>
    %7 = arith.maximumf %5, %6 : vector<304x32xf32>
    %cst_6 = arith.constant 0.000000e+00 : f32
    %8 = vector.broadcast %cst_6 : f32 to vector<304x32xf32>
    %9 = arith.subf %8, %5 : vector<304x32xf32>
    %10 = math.exp %9 : vector<304x32xf32>
    %cst_7 = arith.constant 1.000000e+00 : f32
    %11 = vector.broadcast %cst_7 : f32 to vector<304x32xf32>
    %12 = arith.addf %11, %10 : vector<304x32xf32>
    %cst_8 = arith.constant 1.000000e+00 : f32
    %13 = vector.broadcast %cst_8 : f32 to vector<304x32xf32>
    %14 = arith.divf %13, %12 : vector<304x32xf32>
    %15 = arith.truncf %7 : vector<304x32xf32> to vector<304x32xbf16>
    %c0_9 = arith.constant 0 : index
    %c0_10 = arith.constant 0 : index
    %16 = vector.load %arg4[%c0_9, %c0_10] : memref<32x128xbf16, #tpu.memory_space<vmem>>, vector<32x128xbf16>
    %cst_11 = arith.constant dense<0.000000e+00> : vector<304x128xf32>
    %17 = tpu.matmul %15, %16, %cst_11 {dimension_numbers = #tpu.dot_dimension_numbers<[1], [0], [0], [1], [0, 0, 1, 1], [], []>} : vector<304x32xbf16>, vector<32x128xbf16>, vector<304x128xf32> -> vector<304x128xf32>
    %18 = arith.truncf %14 : vector<304x32xf32> to vector<304x32xbf16>
    %c0_12 = arith.constant 0 : index
    %c0_13 = arith.constant 0 : index
    %19 = vector.load %arg5[%c0_12, %c0_13] : memref<32x128xbf16, #tpu.memory_space<vmem>>, vector<32x128xbf16>
    %cst_14 = arith.constant dense<0.000000e+00> : vector<304x128xf32>
    %20 = tpu.matmul %18, %19, %cst_14 {dimension_numbers = #tpu.dot_dimension_numbers<[1], [0], [0], [1], [0, 0, 1, 1], [], []>} : vector<304x32xbf16>, vector<32x128xbf16>, vector<304x128xf32> -> vector<304x128xf32>
    %21 = arith.addf %17, %20 : vector<304x128xf32>
    %c0_15 = arith.constant 0 : index
    %c0_16 = arith.constant 0 : index
    %22 = vector.load %arg6[%c0_15, %c0_16] : memref<1x128xf32, #tpu.memory_space<vmem>>, vector<1x128xf32>
    %23 = vector.broadcast %22 : vector<1x128xf32> to vector<304x128xf32>
    %24 = arith.addf %21, %23 : vector<304x128xf32>
    %cst_17 = arith.constant 0.000000e+00 : f32
    %25 = vector.broadcast %cst_17 : f32 to vector<304x128xf32>
    %26 = arith.maximumf %24, %25 : vector<304x128xf32>
    %27 = arith.truncf %26 : vector<304x128xf32> to vector<304x128xbf16>
    %c0_18 = arith.constant 0 : index
    %c0_19 = arith.constant 0 : index
    %28 = vector.load %arg7[%c0_18, %c0_19] : memref<128x64xbf16, #tpu.memory_space<vmem>>, vector<128x64xbf16>
    %cst_20 = arith.constant dense<0.000000e+00> : vector<304x64xf32>
    %29 = tpu.matmul %27, %28, %cst_20 {dimension_numbers = #tpu.dot_dimension_numbers<[1], [0], [0], [1], [0, 0, 1, 1], [], []>} : vector<304x128xbf16>, vector<128x64xbf16>, vector<304x64xf32> -> vector<304x64xf32>
    %c0_21 = arith.constant 0 : index
    %c0_22 = arith.constant 0 : index
    %30 = vector.load %arg8[%c0_21, %c0_22] : memref<1x64xf32, #tpu.memory_space<vmem>>, vector<1x64xf32>
    %31 = vector.broadcast %30 : vector<1x64xf32> to vector<304x64xf32>
    %32 = arith.addf %29, %31 : vector<304x64xf32>
    %33 = tpu.iota {dimensions = array<i32: 1>} : vector<304x64xi32>
    %c32_i32 = arith.constant 32 : i32
    %34 = vector.broadcast %c32_i32 : i32 to vector<304x64xi32>
    %35 = arith.cmpi slt, %33, %34 : vector<304x64xi32>
    %cst_23 = arith.constant 0.000000e+00 : f32
    %36 = vector.broadcast %cst_23 : f32 to vector<304x64xf32>
    %37 = arith.maximumf %32, %36 : vector<304x64xf32>
    %cst_24 = arith.constant 0.000000e+00 : f32
    %38 = vector.broadcast %cst_24 : f32 to vector<304x64xf32>
    %39 = arith.subf %38, %32 : vector<304x64xf32>
    %40 = math.exp %39 : vector<304x64xf32>
    %cst_25 = arith.constant 1.000000e+00 : f32
    %41 = vector.broadcast %cst_25 : f32 to vector<304x64xf32>
    %42 = arith.addf %41, %40 : vector<304x64xf32>
    %cst_26 = arith.constant 1.000000e+00 : f32
    %43 = vector.broadcast %cst_26 : f32 to vector<304x64xf32>
    %44 = arith.divf %43, %42 : vector<304x64xf32>
    %45 = arith.select %35, %37, %44 : vector<304x64xi1>, vector<304x64xf32>
    %46 = arith.truncf %45 : vector<304x64xf32> to vector<304x64xbf16>
    %c0_27 = arith.constant 0 : index
    %c0_28 = arith.constant 0 : index
    %47 = vector.load %arg9[%c0_27, %c0_28] : memref<64x16xbf16, #tpu.memory_space<vmem>>, vector<64x16xbf16>
    %cst_29 = arith.constant dense<0.000000e+00> : vector<304x16xf32>
    %48 = tpu.matmul %46, %47, %cst_29 {dimension_numbers = #tpu.dot_dimension_numbers<[1], [0], [0], [1], [0, 0, 1, 1], [], []>} : vector<304x64xbf16>, vector<64x16xbf16>, vector<304x16xf32> -> vector<304x16xf32>
    %c0_30 = arith.constant 0 : index
    %c0_31 = arith.constant 0 : index
    %49 = vector.load %arg10[%c0_30, %c0_31] : memref<1x16xf32, #tpu.memory_space<vmem>>, vector<1x16xf32>
    %50 = vector.broadcast %49 : vector<1x16xf32> to vector<304x16xf32>
    %51 = arith.addf %48, %50 : vector<304x16xf32>
    %cst_32 = arith.constant 0.000000e+00 : f32
    %52 = vector.broadcast %cst_32 : f32 to vector<304x16xf32>
    %53 = arith.maximumf %51, %52 : vector<304x16xf32>
    %c0_33 = arith.constant 0 : index
    %c0_34 = arith.constant 0 : index
    %54 = vector.load %arg11[%c0_33, %c0_34] : memref<1x16xf32, #tpu.memory_space<vmem>>, vector<1x16xf32>
    %55 = vector.broadcast %54 : vector<1x16xf32> to vector<304x16xf32>
    %56 = arith.mulf %53, %55 : vector<304x16xf32>
    %cst_35 = arith.constant dense<0.000000e+00> : vector<304xf32>
    %57 = vector.multi_reduction <add>, %56, %cst_35 [1] : vector<304x16xf32> to vector<304xf32>
    %58 = vector.shape_cast %57 : vector<304xf32> to vector<304x1xf32>
    %c0_36 = arith.constant 0 : index
    %c0_37 = arith.constant 0 : index
    %59 = vector.load %arg12[%c0_36, %c0_37] : memref<1x1xf32, #tpu.memory_space<vmem>>, vector<1x1xf32>
    %60 = vector.broadcast %59 : vector<1x1xf32> to vector<304x1xf32>
    %61 = arith.addf %58, %60 : vector<304x1xf32>
    %cst_38 = arith.constant 0.000000e+00 : f32
    %62 = vector.broadcast %cst_38 : f32 to vector<304x1xf32>
    %63 = arith.subf %62, %61 : vector<304x1xf32>
    %64 = math.exp %63 : vector<304x1xf32>
    %cst_39 = arith.constant 1.000000e+00 : f32
    %65 = vector.broadcast %cst_39 : f32 to vector<304x1xf32>
    %66 = arith.addf %65, %64 : vector<304x1xf32>
    %cst_40 = arith.constant 1.000000e+00 : f32
    %67 = vector.broadcast %cst_40 : f32 to vector<304x1xf32>
    %68 = arith.divf %67, %66 : vector<304x1xf32>
    %c0_41 = arith.constant 0 : index
    %c0_42 = arith.constant 0 : index
    %69 = vector.load %arg13[%c0_41, %c0_42] : memref<304x1xf32, #tpu.memory_space<vmem>>, vector<304x1xf32>
    tpu.vector_store %arg13[%c0_41, %c0_42], %68 {strides = array<i32>} : memref<304x1xf32, #tpu.memory_space<vmem>>, vector<304x1xf32>,
    return
  }
  func.func @transform_0(%arg0: i32) -> (i32, i32) {
    %c0_i32 = arith.constant 0 : i32
    %c0_i32_0 = arith.constant 0 : i32
    return %arg0, %c0_i32 : i32, i32
  }
  func.func @transform_1(%arg0: i32) -> (i32, i32) {
    %c0_i32 = arith.constant 0 : i32
    %c0_i32_0 = arith.constant 0 : i32
    %c0_i32_1 = arith.constant 0 : i32
    return %c0_i32, %c0_i32_0 : i32, i32
  }
  func.func @transform_2(%arg0: i32) -> (i32, i32) {
    %c0_i32 = arith.constant 0 : i32
    %c0_i32_0 = arith.constant 0 : i32
    %c0_i32_1 = arith.constant 0 : i32
    return %c0_i32, %c0_i32_0 : i32, i32
  }
  func.func @transform_3(%arg0: i32) -> (i32, i32) {
    %c0_i32 = arith.constant 0 : i32
    %c0_i32_0 = arith.constant 0 : i32
    %c0_i32_1 = arith.constant 0 : i32
    return %c0_i32, %c0_i32_0 : i32, i32
  }
  func.func @transform_4(%arg0: i32) -> (i32, i32) {
    %c0_i32 = arith.constant 0 : i32
    %c0_i32_0 = arith.constant 0 : i32
    %c0_i32_1 = arith.constant 0 : i32
    return %c0_i32, %c0_i32_0 : i32, i32
  }
  func.func @transform_5(%arg0: i32) -> (i32, i32) {
    %c0_i32 = arith.constant 0 : i32
    %c0_i32_0 = arith.constant 0 : i32
    %c0_i32_1 = arith.constant 0 : i32
    return %c0_i32, %c0_i32_0 : i32, i32
  }
  func.func @transform_6(%arg0: i32) -> (i32, i32) {
    %c0_i32 = arith.constant 0 : i32
    %c0_i32_0 = arith.constant 0 : i32
    %c0_i32_1 = arith.constant 0 : i32
    return %c0_i32, %c0_i32_0 : i32, i32
  }
  func.func @transform_7(%arg0: i32) -> (i32, i32) {
    %c0_i32 = arith.constant 0 : i32
    %c0_i32_0 = arith.constant 0 : i32
    %c0_i32_1 = arith.constant 0 : i32
    return %c0_i32, %c0_i32_0 : i32, i32
  }
  func.func @transform_8(%arg0: i32) -> (i32, i32) {
    %c0_i32 = arith.constant 0 : i32
    %c0_i32_0 = arith.constant 0 : i32
    %c0_i32_1 = arith.constant 0 : i32
    return %c0_i32, %c0_i32_0 : i32, i32
  }
  func.func @transform_9(%arg0: i32) -> (i32, i32) {
    %c0_i32 = arith.constant 0 : i32
    %c0_i32_0 = arith.constant 0 : i32
    %c0_i32_1 = arith.constant 0 : i32
    return %c0_i32, %c0_i32_0 : i32, i32
  }
  func.func @transform_10(%arg0: i32) -> (i32, i32) {
    %c0_i32 = arith.constant 0 : i32
    %c0_i32_0 = arith.constant 0 : i32
    %c0_i32_1 = arith.constant 0 : i32
    return %c0_i32, %c0_i32_0 : i32, i32
  }
  func.func @transform_11(%arg0: i32) -> (i32, i32) {
    %c0_i32 = arith.constant 0 : i32
    %c0_i32_0 = arith.constant 0 : i32
    %c0_i32_1 = arith.constant 0 : i32
    return %c0_i32, %c0_i32_0 : i32, i32
  }
  func.func @transform_12(%arg0: i32) -> (i32, i32) {
    %c0_i32 = arith.constant 0 : i32
    %c0_i32_0 = arith.constant 0 : i32
    return %arg0, %c0_i32 : i32, i32
  }
}

</mosaic_0001>

<llo_original>
// kernel: mlp_forward.1
$region0: #{mlp_forward.1}
  #allocation0 [shape = 'u32[]', space=smem, size = 0x4, offset = 0x4, fixed_abs, tag = 'smem constant byte address 0x4 - core index']
  #allocation1 [shape = 'u32[144,128]{1,0:T(1,128)}', space=vmem, size = 0x12000, scoped, tag = 'internal scratch']
  #allocation2 [shape = 'f32[1,1]{1,0:T(1,128)S(1)}', space=vmem, size = 0x200, scoped, tag = 'scoped memory for mlp_forward.1']
  %s0 = inlined_call_operand.vmem [shape: bf16[304,14], index: 0, kind: input, shape index: {}]
  %s1 = inlined_call_operand.vmem [shape: bf16[14,32], index: 1, kind: input, shape index: {}]
  %s2 = inlined_call_operand.vmem [shape: f32[1,32], index: 2, kind: input, shape index: {}]
  %s3 = inlined_call_operand.vmem [shape: bf16[32,128], index: 3, kind: input, shape index: {}]
  %s4 = inlined_call_operand.vmem [shape: bf16[32,128], index: 4, kind: input, shape index: {}]
  %s5 = inlined_call_operand.vmem [shape: f32[1,128], index: 5, kind: input, shape index: {}]
  %s6 = inlined_call_operand.vmem [shape: bf16[128,64], index: 6, kind: input, shape index: {}]
  %s7 = inlined_call_operand.vmem [shape: f32[1,64], index: 7, kind: input, shape index: {}]
  %s8 = inlined_call_operand.vmem [shape: bf16[64,16], index: 8, kind: input, shape index: {}]
  %s9 = inlined_call_operand.vmem [shape: f32[1,16], index: 9, kind: input, shape index: {}]
  %s10 = inlined_call_operand.vmem [shape: f32[1,16], index: 10, kind: input, shape index: {}]
  %s11 = inlined_call_operand.<no memory space> [shape: f32[1,1], index: 11, kind: input, shape index: {}]
  %s12 = inlined_call_operand.vmem [shape: f32[304,1], index: 12, kind: output, shape index: {}]
  %s13 = sld [smem:[#allocation0]]
  $region58: #{mlp_forward.1} parent=0
    _
  %s15 = ssub.s32 1, %s13
  %s16 = scalar_select 0, %s15, %s13
  %v17 = vstv %s11
  %18 = vst [vmem:[#allocation2] sm:$0x1] %v17
  // Predicated region
  $region2: #{mlp_forward.1} parent=0 // pred_check
    _
  $region3: #{mlp_forward.1} parent=0 // pred_check_branch
    %20 = sbr.rel (0) target = $region5
  $region4: #{mlp_forward.1} parent=0 // pred_region
    _
  $region5: #{mlp_forward.1} parent=0 // pred_fallthru
    _
  // Predicated region
  $region6: #{mlp_forward.1} parent=0 // pred_check
    _
  $region7: #{mlp_forward.1} parent=0 // pred_check_branch
    %22 = sbr.rel (0) target = $region9
  $region8: #{mlp_forward.1} parent=0 // pred_region
    _
  $region9: #{mlp_forward.1} parent=0 // pred_fallthru
    _
  // Predicated region
  $region10: #{mlp_forward.1} parent=0 // pred_check
    _
  $region11: #{mlp_forward.1} parent=0 // pred_check_branch
    %24 = sbr.rel (0) target = $region13
  $region12: #{mlp_forward.1} parent=0 // pred_region
    _
  $region13: #{mlp_forward.1} parent=0 // pred_fallthru
    _
  // Predicated region
  $region14: #{mlp_forward.1} parent=0 // pred_check
    _
  $region15: #{mlp_forward.1} parent=0 // pred_check_branch
    %26 = sbr.rel (0) target = $region17
  $region16: #{mlp_forward.1} parent=0 // pred_region
    _
  $region17: #{mlp_forward.1} parent=0 // pred_fallthru
    _
  // Predicated region
  $region18: #{mlp_forward.1} parent=0 // pred_check
    _
  $region19: #{mlp_forward.1} parent=0 // pred_check_branch
    %28 = sbr.rel (0) target = $region21
  $region20: #{mlp_forward.1} parent=0 // pred_region
    _
  $region21: #{mlp_forward.1} parent=0 // pred_fallthru
    _
  // Predicated region
  $region22: #{mlp_forward.1} parent=0 // pred_check
    _
  $region23: #{mlp_forward.1} parent=0 // pred_check_branch
    %30 = sbr.rel (0) target = $region25
  $region24: #{mlp_forward.1} parent=0 // pred_region
    _
  $region25: #{mlp_forward.1} parent=0 // pred_fallthru
    _
  // Predicated region
  $region26: #{mlp_forward.1} parent=0 // pred_check
    _
  $region27: #{mlp_forward.1} parent=0 // pred_check_branch
    %32 = sbr.rel (0) target = $region29
  $region28: #{mlp_forward.1} parent=0 // pred_region
    _
  $region29: #{mlp_forward.1} parent=0 // pred_fallthru
    _
  // Predicated region
  $region30: #{mlp_forward.1} parent=0 // pred_check
    _
  $region31: #{mlp_forward.1} parent=0 // pred_check_branch
    %34 = sbr.rel (0) target = $region33
  $region32: #{mlp_forward.1} parent=0 // pred_region
    _
  $region33: #{mlp_forward.1} parent=0 // pred_fallthru
    _
  // Predicated region
  $region34: #{mlp_forward.1} parent=0 // pred_check
    _
  $region35: #{mlp_forward.1} parent=0 // pred_check_branch
    %36 = sbr.rel (0) target = $region37
  $region36: #{mlp_forward.1} parent=0 // pred_region
    _
  $region37: #{mlp_forward.1} parent=0 // pred_fallthru
    _
  // Predicated region
  $region38: #{mlp_forward.1} parent=0 // pred_check
    _
  $region39: #{mlp_forward.1} parent=0 // pred_check_branch
    %38 = sbr.rel (0) target = $region41
  $region40: #{mlp_forward.1} parent=0 // pred_region
    _
  $region41: #{mlp_forward.1} parent=0 // pred_fallthru
    _
  // Predicated region
  $region42: #{mlp_forward.1} parent=0 // pred_check
    _
  $region43: #{mlp_forward.1} parent=0 // pred_check_branch
    %40 = sbr.rel (0) target = $region45
  $region44: #{mlp_forward.1} parent=0 // pred_region
    _
  $region45: #{mlp_forward.1} parent=0 // pred_fallthru
    _
  // Predicated region
  $region46: #{mlp_forward.1} parent=0 // pred_check
    _
  $region47: #{mlp_forward.1} parent=0 // pred_check_branch
    %42 = sbr.rel (0) target = $region49
  $region48: #{mlp_forward.1} parent=0 // pred_region
    _
  $region49: #{mlp_forward.1} parent=0 // pred_fallthru
    _
  %v44 = vld [vmem:[%s0] sm:$0xf]
  %v45 = vld [vmem:[%s0 + $0x4] sm:$0xf]
  %v46 = vld [vmem:[%s0 + $0x8] sm:$0xf]
  %v47 = vld [vmem:[%s0 + $0xc] sm:$0xf]
  %v48 = vld [vmem:[%s0 + $0x10] sm:$0xf]
  %v49 = vld [vmem:[%s0 + $0x14] sm:$0xf]
  %v50 = vld [vmem:[%s0 + $0x18] sm:$0xf]
  %v51 = vld [vmem:[%s0 + $0x1c] sm:$0xf]
  %v52 = vld [vmem:[%s0 + $0x20] sm:$0xf]
  %v53 = vld [vmem:[%s0 + $0x24] sm:$0xf]
  %v54 = vld [vmem:[%s0 + $0x28] sm:$0xf]
  %v55 = vld [vmem:[%s0 + $0x2c] sm:$0xf]
  %v56 = vld [vmem:[%s0 + $0x30] sm:$0xf]
  %v57 = vld [vmem:[%s0 + $0x34] sm:$0xf]
  %v58 = vld [vmem:[%s0 + $0x38] sm:$0xf]
  %v59 = vld [vmem:[%s0 + $0x3c] sm:$0xf]
  %v60 = vld [vmem:[%s0 + $0x40] sm:$0xf]
  %v61 = vld [vmem:[%s0 + $0x44] sm:$0xf]
  %v62 = vld [vmem:[%s0 + $0x48] sm:$0xf]
  %v63 = vld [vmem:[%s0 + $0x4c] sm:$0xf]
  %v64 = vld [vmem:[%s0 + $0x50] sm:$0xf]
  %v65 = vld [vmem:[%s0 + $0x54] sm:$0xf]
  %v66 = vld [vmem:[%s0 + $0x58] sm:$0xf]
  %v67 = vld [vmem:[%s0 + $0x5c] sm:$0xf]
  %v68 = vld [vmem:[%s0 + $0x60] sm:$0xf]
  %v69 = vld [vmem:[%s0 + $0x64] sm:$0xf]
  %v70 = vld [vmem:[%s0 + $0x68] sm:$0xf]
  %v71 = vld [vmem:[%s0 + $0x6c] sm:$0xf]
  %v72 = vld [vmem:[%s0 + $0x70] sm:$0xf]
  %v73 = vld [vmem:[%s0 + $0x74] sm:$0xf]
  %v74 = vld [vmem:[%s0 + $0x78] sm:$0xf]
  %v75 = vld [vmem:[%s0 + $0x7c] sm:$0xf]
  %v76 = vld [vmem:[%s0 + $0x80] sm:$0xf]
  %v77 = vld [vmem:[%s0 + $0x84] sm:$0xf]
  %v78 = vld [vmem:[%s0 + $0x88] sm:$0xf]
  %v79 = vld [vmem:[%s0 + $0x8c] sm:$0xf]
  %v80 = vld [vmem:[%s0 + $0x90] sm:$0xf]
  %v81 = vld [vmem:[%s0 + $0x94] sm:$0xf]
  %v82 = vld [vmem:[%s1] sm:$0xf]
  %v83 = vld [vmem:[%s1 + $0x4] sm:$0x7]
  %v84 = vld [vmem:[%s2] sm:$0x1]
  %v86 = vlaneseq
  %v87 = vshrl.u32 %v86, 7
  %v88 = vsub.s32 0, %v87
  %v89 = vrot.slane %v84, %v88
  %v129 = vunpack.c.l.b16 %v44
  %v130 = vunpack.c.l.b16 %v45
  %v131 = vunpack.c.l.b16 %v46
  %v132 = vunpack.c.l.b16 %v47
  %v133 = vunpack.c.l.b16 %v48
  %v134 = vunpack.c.l.b16 %v49
  %v135 = vunpack.c.l.b16 %v50
  %v136 = vunpack.c.l.b16 %v51
  %v137 = vunpack.c.l.b16 %v52
  %v138 = vunpack.c.l.b16 %v53
  %v139 = vunpack.c.l.b16 %v54
  %v140 = vunpack.c.l.b16 %v55
  %v141 = vunpack.c.l.b16 %v56
  %v142 = vunpack.c.l.b16 %v57
  %v143 = vunpack.c.l.b16 %v58
  %v144 = vunpack.c.l.b16 %v59
  %v145 = vunpack.c.l.b16 %v60
  %v146 = vunpack.c.l.b16 %v61
  %v147 = vunpack.c.l.b16 %v62
  %v148 = vunpack.c.l.b16 %v63
  %v149 = vunpack.c.l.b16 %v64
  %v150 = vunpack.c.l.b16 %v65
  %v151 = vunpack.c.l.b16 %v66
  %v152 = vunpack.c.l.b16 %v67
  %v153 = vunpack.c.l.b16 %v68
  %v154 = vunpack.c.l.b16 %v69
  %v155 = vunpack.c.l.b16 %v70
  %v156 = vunpack.c.l.b16 %v71
  %v157 = vunpack.c.l.b16 %v72
  %v158 = vunpack.c.l.b16 %v73
  %v159 = vunpack.c.l.b16 %v74
  %v160 = vunpack.c.l.b16 %v75
  %v161 = vunpack.c.l.b16 %v76
  %v162 = vunpack.c.l.b16 %v77
  %v163 = vunpack.c.l.b16 %v78
  %v164 = vunpack.c.l.b16 %v79
  %v165 = vunpack.c.l.b16 %v80
  %v166 = vunpack.c.l.b16 %v81
  %v167 = vpack.c.b16 %v130, %v129
  %v168 = vpack.c.b16 %v132, %v131
  %v169 = vpack.c.b16 %v134, %v133
  %v170 = vpack.c.b16 %v136, %v135
  %v171 = vpack.c.b16 %v138, %v137
  %v172 = vpack.c.b16 %v140, %v139
  %v173 = vpack.c.b16 %v142, %v141
  %v174 = vpack.c.b16 %v144, %v143
  %v175 = vpack.c.b16 %v146, %v145
  %v176 = vpack.c.b16 %v148, %v147
  %v177 = vpack.c.b16 %v150, %v149
  %v178 = vpack.c.b16 %v152, %v151
  %v179 = vpack.c.b16 %v154, %v153
  %v180 = vpack.c.b16 %v156, %v155
  %v181 = vpack.c.b16 %v158, %v157
  %v182 = vpack.c.b16 %v160, %v159
  %v183 = vpack.c.b16 %v162, %v161
  %v184 = vpack.c.b16 %v164, %v163
  %v185 = vpack.c.b16 %v166, %v165
  %v188 = vunpack.c.l.b16 %v82
  %v189 = vunpack.c.l.b16 %v83
  %v190 = vpack.c.b16 %v189, %v188
  %vm191 = vcmask 113664
  %v193 = vsel %vm191, %v167, 0
  %v196 = vsel %vm191, %v168, 0
  %v199 = vsel %vm191, %v169, 0
  %v202 = vsel %vm191, %v170, 0
  %v205 = vsel %vm191, %v171, 0
  %v208 = vsel %vm191, %v172, 0
  %v211 = vsel %vm191, %v173, 0
  %v214 = vsel %vm191, %v174, 0
  %v217 = vsel %vm191, %v175, 0
  %v220 = vsel %vm191, %v176, 0
  %v223 = vsel %vm191, %v177, 0
  %v226 = vsel %vm191, %v178, 0
  %v229 = vsel %vm191, %v179, 0
  %v232 = vsel %vm191, %v180, 0
  %v235 = vsel %vm191, %v181, 0
  %v238 = vsel %vm191, %v182, 0
  %v241 = vsel %vm191, %v183, 0
  %v244 = vsel %vm191, %v184, 0
  %v247 = vsel %vm191, %v185, 0
  %vm249 = vcmask 1046528
  %v251 = vsel %vm249, %v190, 0
  %253 = vmatprep.subr.bf16.mxu0 0
  %254 = vmatpush1.bf16.msra.mxu0 0
  %255 = vmatprep.subr.bf16.mxu0 0
  %256 = vmatpush1.bf16.msra.mxu0 0
  %257 = vmatprep.subr.bf16.mxu0 0
  %258 = vmatpush1.bf16.msra.mxu0 0
  %259 = vmatprep.subr.bf16.mxu0 0
  %260 = vmatpush1.bf16.msra.mxu0 0
  %261 = vmatprep.subr.bf16.mxu0 0
  %262 = vmatpush1.bf16.msra.mxu0 0
  %263 = vmatprep.subr.bf16.mxu0 0
  %264 = vmatpush1.bf16.msra.mxu0 0
  %265 = vmatprep.subr.bf16.mxu0 0
  %266 = vmatpush1.bf16.msra.mxu0 0
  %267 = vmatprep.subr.bf16.mxu0 0
  %268 = vmatpush1.bf16.msra.mxu0 %v251
  %269 = vmatprep.subr.bf16.mxu0 0
  %270 = vmatpush2.bf16.msra.mxu0 0
  %271 = vmatprep.subr.bf16.mxu0 0
  %272 = vmatpush2.bf16.msra.mxu0 0
  %273 = vmatprep.subr.bf16.mxu0 0
  %274 = vmatpush2.bf16.msra.mxu0 0
  %275 = vmatprep.subr.bf16.mxu0 0
  %276 = vmatpush2.bf16.msra.mxu0 0
  %277 = vmatprep.subr.bf16.mxu0 0
  %278 = vmatpush2.bf16.msra.mxu0 0
  %279 = vmatprep.subr.bf16.mxu0 0
  %280 = vmatpush2.bf16.msra.mxu0 0
  %281 = vmatprep.subr.bf16.mxu0 0
  %282 = vmatpush2.bf16.msra.mxu0 0
  %283 = vmatprep.subr.bf16.mxu0 0
  %284 = vmatpush2.bf16.msra.mxu0 0
  %285 = vmatprep.mubr.bf16.mxu0 0
  %286 = vmatmul.mubr.bf16.gmra.mxu0 %v193
  %v287 = vpop.f32.mrf.mxu0
  %v288 = vadd.f32 %v89, %v287
  %v289 = vpop.f32.mrf.mxu0
  %v290 = vpop.f32.mrf.mxu0
  %v291 = vadd.f32 %v89, %v290
  %v292 = vpop.f32.mrf.mxu0
  %293 = vmatprep.mubr.bf16.mxu0 0
  %294 = vmatmul.mubr.bf16.gmra.mxu0 %v196
  %v295 = vpop.f32.mrf.mxu0
  %v296 = vadd.f32 %v89, %v295
  %v297 = vpop.f32.mrf.mxu0
  %v298 = vpop.f32.mrf.mxu0
  %v299 = vadd.f32 %v89, %v298
  %v300 = vpop.f32.mrf.mxu0
  %301 = vmatprep.mubr.bf16.mxu0 0
  %302 = vmatmul.mubr.bf16.gmra.mxu0 %v199
  %v303 = vpop.f32.mrf.mxu0
  %v304 = vadd.f32 %v89, %v303
  %v305 = vpop.f32.mrf.mxu0
  %v306 = vpop.f32.mrf.mxu0
  %v307 = vadd.f32 %v89, %v306
  %v308 = vpop.f32.mrf.mxu0
  %309 = vmatprep.mubr.bf16.mxu0 0
  %310 = vmatmul.mubr.bf16.gmra.mxu0 %v202
  %v311 = vpop.f32.mrf.mxu0
  %v312 = vadd.f32 %v89, %v311
  %v313 = vpop.f32.mrf.mxu0
  %v314 = vpop.f32.mrf.mxu0
  %v315 = vadd.f32 %v89, %v314
  %v316 = vpop.f32.mrf.mxu0
  %317 = vmatprep.mubr.bf16.mxu0 0
  %318 = vmatmul.mubr.bf16.gmra.mxu0 %v205
  %v319 = vpop.f32.mrf.mxu0
  %v320 = vadd.f32 %v89, %v319
  %v321 = vpop.f32.mrf.mxu0
  %v322 = vpop.f32.mrf.mxu0
  %v323 = vadd.f32 %v89, %v322
  %v324 = vpop.f32.mrf.mxu0
  %325 = vmatprep.mubr.bf16.mxu0 0
  %326 = vmatmul.mubr.bf16.gmra.mxu0 %v208
  %v327 = vpop.f32.mrf.mxu0
  %v328 = vadd.f32 %v89, %v327
  %v329 = vpop.f32.mrf.mxu0
  %v330 = vpop.f32.mrf.mxu0
  %v331 = vadd.f32 %v89, %v330
  %v332 = vpop.f32.mrf.mxu0
  %333 = vmatprep.mubr.bf16.mxu0 0
  %334 = vmatmul.mubr.bf16.gmra.mxu0 %v211
  %v335 = vpop.f32.mrf.mxu0
  %v336 = vadd.f32 %v89, %v335
  %v337 = vpop.f32.mrf.mxu0
  %v338 = vpop.f32.mrf.mxu0
  %v339 = vadd.f32 %v89, %v338
  %v340 = vpop.f32.mrf.mxu0
  %341 = vmatprep.mubr.bf16.mxu0 0
  %342 = vmatmul.mubr.bf16.gmra.mxu0 %v214
  %v343 = vpop.f32.mrf.mxu0
  %v344 = vadd.f32 %v89, %v343
  %v345 = vpop.f32.mrf.mxu0
  %v346 = vpop.f32.mrf.mxu0
  %v347 = vadd.f32 %v89, %v346
  %v348 = vpop.f32.mrf.mxu0
  %349 = vmatprep.mubr.bf16.mxu0 0
  %350 = vmatmul.mubr.bf16.gmra.mxu0 %v217
  %v351 = vpop.f32.mrf.mxu0
  %v352 = vadd.f32 %v89, %v351
  %v353 = vpop.f32.mrf.mxu0
  %v354 = vpop.f32.mrf.mxu0
  %v355 = vadd.f32 %v89, %v354
  %v356 = vpop.f32.mrf.mxu0
  %357 = vmatprep.mubr.bf16.mxu0 0
  %358 = vmatmul.mubr.bf16.gmra.mxu0 %v220
  %v359 = vpop.f32.mrf.mxu0
  %v360 = vadd.f32 %v89, %v359
  %v361 = vpop.f32.mrf.mxu0
  %v362 = vpop.f32.mrf.mxu0
  %v363 = vadd.f32 %v89, %v362
  %v364 = vpop.f32.mrf.mxu0
  %365 = vmatprep.mubr.bf16.mxu0 0
  %366 = vmatmul.mubr.bf16.gmra.mxu0 %v223
  %v367 = vpop.f32.mrf.mxu0
  %v368 = vadd.f32 %v89, %v367
  %v369 = vpop.f32.mrf.mxu0
  %v370 = vpop.f32.mrf.mxu0
  %v371 = vadd.f32 %v89, %v370
  %v372 = vpop.f32.mrf.mxu0
  %373 = vmatprep.mubr.bf16.mxu0 0
  %374 = vmatmul.mubr.bf16.gmra.mxu0 %v226
  %v375 = vpop.f32.mrf.mxu0
  %v376 = vadd.f32 %v89, %v375
  %v377 = vpop.f32.mrf.mxu0
  %v378 = vpop.f32.mrf.mxu0
  %v379 = vadd.f32 %v89, %v378
  %v380 = vpop.f32.mrf.mxu0
  %381 = vmatprep.mubr.bf16.mxu0 0
  %382 = vmatmul.mubr.bf16.gmra.mxu0 %v229
  %v383 = vpop.f32.mrf.mxu0
  %v384 = vadd.f32 %v89, %v383
  %v385 = vpop.f32.mrf.mxu0
  %v386 = vpop.f32.mrf.mxu0
  %v387 = vadd.f32 %v89, %v386
  %v388 = vpop.f32.mrf.mxu0
  %389 = vmatprep.mubr.bf16.mxu0 0
  %390 = vmatmul.mubr.bf16.gmra.mxu0 %v232
  %v391 = vpop.f32.mrf.mxu0
  %v392 = vadd.f32 %v89, %v391
  %v393 = vpop.f32.mrf.mxu0
  %v394 = vpop.f32.mrf.mxu0
  %v395 = vadd.f32 %v89, %v394
  %v396 = vpop.f32.mrf.mxu0
  %397 = vmatprep.mubr.bf16.mxu0 0
  %398 = vmatmul.mubr.bf16.gmra.mxu0 %v235
  %v399 = vpop.f32.mrf.mxu0
  %v400 = vadd.f32 %v89, %v399
  %v401 = vpop.f32.mrf.mxu0
  %v402 = vpop.f32.mrf.mxu0
  %v403 = vadd.f32 %v89, %v402
  %v404 = vpop.f32.mrf.mxu0
  %405 = vmatprep.mubr.bf16.mxu0 0
  %406 = vmatmul.mubr.bf16.gmra.mxu0 %v238
  %v407 = vpop.f32.mrf.mxu0
  %v408 = vadd.f32 %v89, %v407
  %v409 = vpop.f32.mrf.mxu0
  %v410 = vpop.f32.mrf.mxu0
  %v411 = vadd.f32 %v89, %v410
  %v412 = vpop.f32.mrf.mxu0
  %413 = vmatprep.mubr.bf16.mxu0 0
  %414 = vmatmul.mubr.bf16.gmra.mxu0 %v241
  %v415 = vpop.f32.mrf.mxu0
  %v416 = vadd.f32 %v89, %v415
  %v417 = vpop.f32.mrf.mxu0
  %v418 = vpop.f32.mrf.mxu0
  %v419 = vadd.f32 %v89, %v418
  %v420 = vpop.f32.mrf.mxu0
  %421 = vmatprep.mubr.bf16.mxu0 0
  %422 = vmatmul.mubr.bf16.gmra.mxu0 %v244
  %v423 = vpop.f32.mrf.mxu0
  %v424 = vadd.f32 %v89, %v423
  %v425 = vpop.f32.mrf.mxu0
  %v426 = vpop.f32.mrf.mxu0
  %v427 = vadd.f32 %v89, %v426
  %v428 = vpop.f32.mrf.mxu0
  %429 = vmatprep.mubr.bf16.mxu0 0
  %430 = vmatmul.mubr.bf16.gmra.mxu0 %v247
  %v431 = vpop.f32.mrf.mxu0
  %v432 = vadd.f32 %v89, %v431
  %v433 = vpop.f32.mrf.mxu0
  %v434 = vpop.f32.mrf.mxu0
  %v435 = vadd.f32 %v89, %v434
  %v436 = vpop.f32.mrf.mxu0
  %437 = vdwg.mxu0
  %v438 = vmax.f32 %v288, 0.0
  %v439 = vmax.f32 %v291, 0.0
  %v440 = vmax.f32 %v296, 0.0
  %v441 = vmax.f32 %v299, 0.0
  %v442 = vmax.f32 %v304, 0.0
  %v443 = vmax.f32 %v307, 0.0
  %v444 = vmax.f32 %v312, 0.0
  %v445 = vmax.f32 %v315, 0.0
  %v446 = vmax.f32 %v320, 0.0
  %v447 = vmax.f32 %v323, 0.0
  %v448 = vmax.f32 %v328, 0.0
  %v449 = vmax.f32 %v331, 0.0
  %v450 = vmax.f32 %v336, 0.0
  %v451 = vmax.f32 %v339, 0.0
  %v452 = vmax.f32 %v344, 0.0
  %v453 = vmax.f32 %v347, 0.0
  %v454 = vmax.f32 %v352, 0.0
  %v455 = vmax.f32 %v355, 0.0
  %v456 = vmax.f32 %v360, 0.0
  %v457 = vmax.f32 %v363, 0.0
  %v458 = vmax.f32 %v368, 0.0
  %v459 = vmax.f32 %v371, 0.0
  %v460 = vmax.f32 %v376, 0.0
  %v461 = vmax.f32 %v379, 0.0
  %v462 = vmax.f32 %v384, 0.0
  %v463 = vmax.f32 %v387, 0.0
  %v464 = vmax.f32 %v392, 0.0
  %v465 = vmax.f32 %v395, 0.0
  %v466 = vmax.f32 %v400, 0.0
  %v467 = vmax.f32 %v403, 0.0
  %v468 = vmax.f32 %v408, 0.0
  %v469 = vmax.f32 %v411, 0.0
  %v470 = vmax.f32 %v416, 0.0
  %v471 = vmax.f32 %v419, 0.0
  %v472 = vmax.f32 %v424, 0.0
  %v473 = vmax.f32 %v427, 0.0
  %v474 = vmax.f32 %v432, 0.0
  %v475 = vmax.f32 %v435, 0.0
  %v476 = vsub.f32 0.0, %v288
  %v477 = vsub.f32 0.0, %v291
  %v478 = vsub.f32 0.0, %v296
  %v479 = vsub.f32 0.0, %v299
  %v480 = vsub.f32 0.0, %v304
  %v481 = vsub.f32 0.0, %v307
  %v482 = vsub.f32 0.0, %v312
  %v483 = vsub.f32 0.0, %v315
  %v484 = vsub.f32 0.0, %v320
  %v485 = vsub.f32 0.0, %v323
  %v486 = vsub.f32 0.0, %v328
  %v487 = vsub.f32 0.0, %v331
  %v488 = vsub.f32 0.0, %v336
  %v489 = vsub.f32 0.0, %v339
  %v490 = vsub.f32 0.0, %v344
  %v491 = vsub.f32 0.0, %v347
  %v492 = vsub.f32 0.0, %v352
  %v493 = vsub.f32 0.0, %v355
  %v494 = vsub.f32 0.0, %v360
  %v495 = vsub.f32 0.0, %v363
  %v496 = vsub.f32 0.0, %v368
  %v497 = vsub.f32 0.0, %v371
  %v498 = vsub.f32 0.0, %v376
  %v499 = vsub.f32 0.0, %v379
  %v500 = vsub.f32 0.0, %v384
  %v501 = vsub.f32 0.0, %v387
  %v502 = vsub.f32 0.0, %v392
  %v503 = vsub.f32 0.0, %v395
  %v504 = vsub.f32 0.0, %v400
  %v505 = vsub.f32 0.0, %v403
  %v506 = vsub.f32 0.0, %v408
  %v507 = vsub.f32 0.0, %v411
  %v508 = vsub.f32 0.0, %v416
  %v509 = vsub.f32 0.0, %v419
  %v510 = vsub.f32 0.0, %v424
  %v511 = vsub.f32 0.0, %v427
  %v512 = vsub.f32 0.0, %v432
  %v513 = vsub.f32 0.0, %v435
  %v514 = vmul.f32 %v476, 1.442695
  %v515 = vpow.pop %v514
  %v516 = vmul.f32 %v477, 1.442695
  %v517 = vpow.pop %v516
  %v518 = vmul.f32 %v478, 1.442695
  %v519 = vpow.pop %v518
  %v520 = vmul.f32 %v479, 1.442695
  %v521 = vpow.pop %v520
  %v522 = vmul.f32 %v480, 1.442695
  %v523 = vpow.pop %v522
  %v524 = vmul.f32 %v481, 1.442695
  %v525 = vpow.pop %v524
  %v526 = vmul.f32 %v482, 1.442695
  %v527 = vpow.pop %v526
  %v528 = vmul.f32 %v483, 1.442695
  %v529 = vpow.pop %v528
  %v530 = vmul.f32 %v484, 1.442695
  %v531 = vpow.pop %v530
  %v532 = vmul.f32 %v485, 1.442695
  %v533 = vpow.pop %v532
  %v534 = vmul.f32 %v486, 1.442695
  %v535 = vpow.pop %v534
  %v536 = vmul.f32 %v487, 1.442695
  %v537 = vpow.pop %v536
  %v538 = vmul.f32 %v488, 1.442695
  %v539 = vpow.pop %v538
  %v540 = vmul.f32 %v489, 1.442695
  %v541 = vpow.pop %v540
  %v542 = vmul.f32 %v490, 1.442695
  %v543 = vpow.pop %v542
  %v544 = vmul.f32 %v491, 1.442695
  %v545 = vpow.pop %v544
  %v546 = vmul.f32 %v492, 1.442695
  %v547 = vpow.pop %v546
  %v548 = vmul.f32 %v493, 1.442695
  %v549 = vpow.pop %v548
  %v550 = vmul.f32 %v494, 1.442695
  %v551 = vpow.pop %v550
  %v552 = vmul.f32 %v495, 1.442695
  %v553 = vpow.pop %v552
  %v554 = vmul.f32 %v496, 1.442695
  %v555 = vpow.pop %v554
  %v556 = vmul.f32 %v497, 1.442695
  %v557 = vpow.pop %v556
  %v558 = vmul.f32 %v498, 1.442695
  %v559 = vpow.pop %v558
  %v560 = vmul.f32 %v499, 1.442695
  %v561 = vpow.pop %v560
  %v562 = vmul.f32 %v500, 1.442695
  %v563 = vpow.pop %v562
  %v564 = vmul.f32 %v501, 1.442695
  %v565 = vpow.pop %v564
  %v566 = vmul.f32 %v502, 1.442695
  %v567 = vpow.pop %v566
  %v568 = vmul.f32 %v503, 1.442695
  %v569 = vpow.pop %v568
  %v570 = vmul.f32 %v504, 1.442695
  %v571 = vpow.pop %v570
  %v572 = vmul.f32 %v505, 1.442695
  %v573 = vpow.pop %v572
  %v574 = vmul.f32 %v506, 1.442695
  %v575 = vpow.pop %v574
  %v576 = vmul.f32 %v507, 1.442695
  %v577 = vpow.pop %v576
  %v578 = vmul.f32 %v508, 1.442695
  %v579 = vpow.pop %v578
  %v580 = vmul.f32 %v509, 1.442695
  %v581 = vpow.pop %v580
  %v582 = vmul.f32 %v510, 1.442695
  %v583 = vpow.pop %v582
  %v584 = vmul.f32 %v511, 1.442695
  %v585 = vpow.pop %v584
  %v586 = vmul.f32 %v512, 1.442695
  %v587 = vpow.pop %v586
  %v588 = vmul.f32 %v513, 1.442695
  %v589 = vpow.pop %v588
  %v590 = vadd.f32 %v515, 1.0
  %v591 = vadd.f32 %v517, 1.0
  %v592 = vadd.f32 %v519, 1.0
  %v593 = vadd.f32 %v521, 1.0
  %v594 = vadd.f32 %v523, 1.0
  %v595 = vadd.f32 %v525, 1.0
  %v596 = vadd.f32 %v527, 1.0
  %v597 = vadd.f32 %v529, 1.0
  %v598 = vadd.f32 %v531, 1.0
  %v599 = vadd.f32 %v533, 1.0
  %v600 = vadd.f32 %v535, 1.0
  %v601 = vadd.f32 %v537, 1.0
  %v602 = vadd.f32 %v539, 1.0
  %v603 = vadd.f32 %v541, 1.0
  %v604 = vadd.f32 %v543, 1.0
  %v605 = vadd.f32 %v545, 1.0
  %v606 = vadd.f32 %v547, 1.0
  %v607 = vadd.f32 %v549, 1.0
  %v608 = vadd.f32 %v551, 1.0
  %v609 = vadd.f32 %v553, 1.0
  %v610 = vadd.f32 %v555, 1.0
  %v611 = vadd.f32 %v557, 1.0
  %v612 = vadd.f32 %v559, 1.0
  %v613 = vadd.f32 %v561, 1.0
  %v614 = vadd.f32 %v563, 1.0
  %v615 = vadd.f32 %v565, 1.0
  %v616 = vadd.f32 %v567, 1.0
  %v617 = vadd.f32 %v569, 1.0
  %v618 = vadd.f32 %v571, 1.0
  %v619 = vadd.f32 %v573, 1.0
  %v620 = vadd.f32 %v575, 1.0
  %v621 = vadd.f32 %v577, 1.0
  %v622 = vadd.f32 %v579, 1.0
  %v623 = vadd.f32 %v581, 1.0
  %v624 = vadd.f32 %v583, 1.0
  %v625 = vadd.f32 %v585, 1.0
  %v626 = vadd.f32 %v587, 1.0
  %v627 = vadd.f32 %v589, 1.0
  %v628 = vrcp.pop %v590
  %v629 = vmul.f32 1.0, %v628
  %v630 = vrcp.pop %v591
  %v631 = vmul.f32 1.0, %v630
  %v632 = vrcp.pop %v592
  %v633 = vmul.f32 1.0, %v632
  %v634 = vrcp.pop %v593
  %v635 = vmul.f32 1.0, %v634
  %v636 = vrcp.pop %v594
  %v637 = vmul.f32 1.0, %v636
  %v638 = vrcp.pop %v595
  %v639 = vmul.f32 1.0, %v638
  %v640 = vrcp.pop %v596
  %v641 = vmul.f32 1.0, %v640
  %v642 = vrcp.pop %v597
  %v643 = vmul.f32 1.0, %v642
  %v644 = vrcp.pop %v598
  %v645 = vmul.f32 1.0, %v644
  %v646 = vrcp.pop %v599
  %v647 = vmul.f32 1.0, %v646
  %v648 = vrcp.pop %v600
  %v649 = vmul.f32 1.0, %v648
  %v650 = vrcp.pop %v601
  %v651 = vmul.f32 1.0, %v650
  %v652 = vrcp.pop %v602
  %v653 = vmul.f32 1.0, %v652
  %v654 = vrcp.pop %v603
  %v655 = vmul.f32 1.0, %v654
  %v656 = vrcp.pop %v604
  %v657 = vmul.f32 1.0, %v656
  %v658 = vrcp.pop %v605
  %v659 = vmul.f32 1.0, %v658
  %v660 = vrcp.pop %v606
  %v661 = vmul.f32 1.0, %v660
  %v662 = vrcp.pop %v607
  %v663 = vmul.f32 1.0, %v662
  %v664 = vrcp.pop %v608
  %v665 = vmul.f32 1.0, %v664
  %v666 = vrcp.pop %v609
  %v667 = vmul.f32 1.0, %v666
  %v668 = vrcp.pop %v610
  %v669 = vmul.f32 1.0, %v668
  %v670 = vrcp.pop %v611
  %v671 = vmul.f32 1.0, %v670
  %v672 = vrcp.pop %v612
  %v673 = vmul.f32 1.0, %v672
  %v674 = vrcp.pop %v613
  %v675 = vmul.f32 1.0, %v674
  %v676 = vrcp.pop %v614
  %v677 = vmul.f32 1.0, %v676
  %v678 = vrcp.pop %v615
  %v679 = vmul.f32 1.0, %v678
  %v680 = vrcp.pop %v616
  %v681 = vmul.f32 1.0, %v680
  %v682 = vrcp.pop %v617
  %v683 = vmul.f32 1.0, %v682
  %v684 = vrcp.pop %v618
  %v685 = vmul.f32 1.0, %v684
  %v686 = vrcp.pop %v619
  %v687 = vmul.f32 1.0, %v686
  %v688 = vrcp.pop %v620
  %v689 = vmul.f32 1.0, %v688
  %v690 = vrcp.pop %v621
  %v691 = vmul.f32 1.0, %v690
  %v692 = vrcp.pop %v622
  %v693 = vmul.f32 1.0, %v692
  %v694 = vrcp.pop %v623
  %v695 = vmul.f32 1.0, %v694
  %v696 = vrcp.pop %v624
  %v697 = vmul.f32 1.0, %v696
  %v698 = vrcp.pop %v625
  %v699 = vmul.f32 1.0, %v698
  %v700 = vrcp.pop %v626
  %v701 = vmul.f32 1.0, %v700
  %v702 = vrcp.pop %v627
  %v703 = vmul.f32 1.0, %v702
  %v704 = vpack.c.bf16 %v439, %v438
  %v705 = vpack.c.bf16 %v441, %v440
  %v706 = vpack.c.bf16 %v443, %v442
  %v707 = vpack.c.bf16 %v445, %v444
  %v708 = vpack.c.bf16 %v447, %v446
  %v709 = vpack.c.bf16 %v449, %v448
  %v710 = vpack.c.bf16 %v451, %v450
  %v711 = vpack.c.bf16 %v453, %v452
  %v712 = vpack.c.bf16 %v455, %v454
  %v713 = vpack.c.bf16 %v457, %v456
  %v714 = vpack.c.bf16 %v459, %v458
  %v715 = vpack.c.bf16 %v461, %v460
  %v716 = vpack.c.bf16 %v463, %v462
  %v717 = vpack.c.bf16 %v465, %v464
  %v718 = vpack.c.bf16 %v467, %v466
  %v719 = vpack.c.bf16 %v469, %v468
  %v720 = vpack.c.bf16 %v471, %v470
  %v721 = vpack.c.bf16 %v473, %v472
  %v722 = vpack.c.bf16 %v475, %v474
  %v723 = vld [vmem:[%s3] sm:$0xf]
  %v724 = vld [vmem:[%s3 + $0x4] sm:$0xf]
  %v725 = vld [vmem:[%s3 + $0x8] sm:$0xf]
  %v726 = vld [vmem:[%s3 + $0xc] sm:$0xf]
  %v727 = vpack.c.bf16 %v631, %v629
  %v728 = vpack.c.bf16 %v635, %v633
  %v729 = vpack.c.bf16 %v639, %v637
  %v730 = vpack.c.bf16 %v643, %v641
  %v731 = vpack.c.bf16 %v647, %v645
  %v732 = vpack.c.bf16 %v651, %v649
  %v733 = vpack.c.bf16 %v655, %v653
  %v734 = vpack.c.bf16 %v659, %v657
  %v735 = vpack.c.bf16 %v663, %v661
  %v736 = vpack.c.bf16 %v667, %v665
  %v737 = vpack.c.bf16 %v671, %v669
  %v738 = vpack.c.bf16 %v675, %v673
  %v739 = vpack.c.bf16 %v679, %v677
  %v740 = vpack.c.bf16 %v683, %v681
  %v741 = vpack.c.bf16 %v687, %v685
  %v742 = vpack.c.bf16 %v691, %v689
  %v743 = vpack.c.bf16 %v695, %v693
  %v744 = vpack.c.bf16 %v699, %v697
  %v745 = vpack.c.bf16 %v703, %v701
  %v746 = vld [vmem:[%s4] sm:$0xf]
  %v747 = vld [vmem:[%s4 + $0x4] sm:$0xf]
  %v748 = vld [vmem:[%s4 + $0x8] sm:$0xf]
  %v749 = vld [vmem:[%s4 + $0xc] sm:$0xf]
  %v754 = vunpack.c.l.b16 %v746
  %v755 = vunpack.c.l.b16 %v747
  %v756 = vunpack.c.l.b16 %v748
  %v757 = vunpack.c.l.b16 %v749
  %v758 = vpack.c.b16 %v755, %v754
  %v759 = vpack.c.b16 %v757, %v756
  %vm762 = vcmask 261120
  %v764 = vsel %vm762, %v727, 0
  %v767 = vsel %vm762, %v728, 0
  %v770 = vsel %vm762, %v729, 0
  %v773 = vsel %vm762, %v730, 0
  %v776 = vsel %vm762, %v731, 0
  %v779 = vsel %vm762, %v732, 0
  %v782 = vsel %vm762, %v733, 0
  %v785 = vsel %vm762, %v734, 0
  %v788 = vsel %vm762, %v735, 0
  %v791 = vsel %vm762, %v736, 0
  %v794 = vsel %vm762, %v737, 0
  %v797 = vsel %vm762, %v738, 0
  %v800 = vsel %vm762, %v739, 0
  %v803 = vsel %vm762, %v740, 0
  %v806 = vsel %vm762, %v741, 0
  %v809 = vsel %vm762, %v742, 0
  %v812 = vsel %vm762, %v743, 0
  %v815 = vsel %vm762, %v744, 0
  %v818 = vsel %vm762, %v745, 0
  %820 = vmatprep.subr.bf16.mxu0 0
  %821 = vmatpush1.bf16.msra.mxu0 0
  %822 = vmatprep.subr.bf16.mxu0 0
  %823 = vmatpush1.bf16.msra.mxu0 0
  %824 = vmatprep.subr.bf16.mxu0 0
  %825 = vmatpush1.bf16.msra.mxu0 0
  %826 = vmatprep.subr.bf16.mxu0 0
  %827 = vmatpush1.bf16.msra.mxu0 0
  %828 = vmatprep.subr.bf16.mxu0 0
  %829 = vmatpush1.bf16.msra.mxu0 0
  %830 = vmatprep.subr.bf16.mxu0 0
  %831 = vmatpush1.bf16.msra.mxu0 0
  %832 = vmatprep.subr.bf16.mxu0 0
  %833 = vmatpush1.bf16.msra.mxu0 %v759
  %834 = vmatprep.subr.bf16.mxu0 0
  %835 = vmatpush1.bf16.msra.mxu0 %v758
  %836 = vmatprep.subr.bf16.mxu0 0
  %837 = vmatpush2.bf16.msra.mxu0 0
  %838 = vmatprep.subr.bf16.mxu0 0
  %839 = vmatpush2.bf16.msra.mxu0 0
  %840 = vmatprep.subr.bf16.mxu0 0
  %841 = vmatpush2.bf16.msra.mxu0 0
  %842 = vmatprep.subr.bf16.mxu0 0
  %843 = vmatpush2.bf16.msra.mxu0 0
  %844 = vmatprep.subr.bf16.mxu0 0
  %845 = vmatpush2.bf16.msra.mxu0 0
  %846 = vmatprep.subr.bf16.mxu0 0
  %847 = vmatpush2.bf16.msra.mxu0 0
  %848 = vmatprep.subr.bf16.mxu0 0
  %849 = vmatpush2.bf16.msra.mxu0 0
  %850 = vmatprep.subr.bf16.mxu0 0
  %851 = vmatpush2.bf16.msra.mxu0 0
  %852 = vmatprep.mubr.bf16.mxu0 0
  %853 = vmatmul.mubr.bf16.gmra.mxu0 %v764
  %v854 = vpop.f32.mrf.mxu0
  %v855 = vadd.f32 0.0, %v854
  %v856 = vpop.f32.mrf.mxu0
  %v857 = vpop.f32.mrf.mxu0
  %v858 = vadd.f32 0.0, %v857
  %v859 = vpop.f32.mrf.mxu0
  %860 = vmatprep.mubr.bf16.mxu0 0
  %861 = vmatmul.mubr.bf16.gmra.mxu0 %v767
  %v862 = vpop.f32.mrf.mxu0
  %v863 = vadd.f32 0.0, %v862
  %v864 = vpop.f32.mrf.mxu0
  %v865 = vpop.f32.mrf.mxu0
  %v866 = vadd.f32 0.0, %v865
  %v867 = vpop.f32.mrf.mxu0
  %868 = vmatprep.mubr.bf16.mxu0 0
  %869 = vmatmul.mubr.bf16.gmra.mxu0 %v770
  %v870 = vpop.f32.mrf.mxu0
  %v871 = vadd.f32 0.0, %v870
  %v872 = vpop.f32.mrf.mxu0
  %v873 = vpop.f32.mrf.mxu0
  %v874 = vadd.f32 0.0, %v873
  %v875 = vpop.f32.mrf.mxu0
  %876 = vmatprep.mubr.bf16.mxu0 0
  %877 = vmatmul.mubr.bf16.gmra.mxu0 %v773
  %v878 = vpop.f32.mrf.mxu0
  %v879 = vadd.f32 0.0, %v878
  %v880 = vpop.f32.mrf.mxu0
  %v881 = vpop.f32.mrf.mxu0
  %v882 = vadd.f32 0.0, %v881
  %v883 = vpop.f32.mrf.mxu0
  %884 = vmatprep.mubr.bf16.mxu0 0
  %885 = vmatmul.mubr.bf16.gmra.mxu0 %v776
  %v886 = vpop.f32.mrf.mxu0
  %v887 = vadd.f32 0.0, %v886
  %v888 = vpop.f32.mrf.mxu0
  %v889 = vpop.f32.mrf.mxu0
  %v890 = vadd.f32 0.0, %v889
  %v891 = vpop.f32.mrf.mxu0
  %892 = vmatprep.mubr.bf16.mxu0 0
  %893 = vmatmul.mubr.bf16.gmra.mxu0 %v779
  %v894 = vpop.f32.mrf.mxu0
  %v895 = vadd.f32 0.0, %v894
  %v896 = vpop.f32.mrf.mxu0
  %v897 = vpop.f32.mrf.mxu0
  %v898 = vadd.f32 0.0, %v897
  %v899 = vpop.f32.mrf.mxu0
  %900 = vmatprep.mubr.bf16.mxu0 0
  %901 = vmatmul.mubr.bf16.gmra.mxu0 %v782
  %v902 = vpop.f32.mrf.mxu0
  %v903 = vadd.f32 0.0, %v902
  %v904 = vpop.f32.mrf.mxu0
  %v905 = vpop.f32.mrf.mxu0
  %v906 = vadd.f32 0.0, %v905
  %v907 = vpop.f32.mrf.mxu0
  %908 = vmatprep.mubr.bf16.mxu0 0
  %909 = vmatmul.mubr.bf16.gmra.mxu0 %v785
  %v910 = vpop.f32.mrf.mxu0
  %v911 = vadd.f32 0.0, %v910
  %v912 = vpop.f32.mrf.mxu0
  %v913 = vpop.f32.mrf.mxu0
  %v914 = vadd.f32 0.0, %v913
  %v915 = vpop.f32.mrf.mxu0
  %916 = vmatprep.mubr.bf16.mxu0 0
  %917 = vmatmul.mubr.bf16.gmra.mxu0 %v788
  %v918 = vpop.f32.mrf.mxu0
  %v919 = vadd.f32 0.0, %v918
  %v920 = vpop.f32.mrf.mxu0
  %v921 = vpop.f32.mrf.mxu0
  %v922 = vadd.f32 0.0, %v921
  %v923 = vpop.f32.mrf.mxu0
  %924 = vmatprep.mubr.bf16.mxu0 0
  %925 = vmatmul.mubr.bf16.gmra.mxu0 %v791
  %v926 = vpop.f32.mrf.mxu0
  %v927 = vadd.f32 0.0, %v926
  %v928 = vpop.f32.mrf.mxu0
  %v929 = vpop.f32.mrf.mxu0
  %v930 = vadd.f32 0.0, %v929
  %v931 = vpop.f32.mrf.mxu0
  %932 = vmatprep.mubr.bf16.mxu0 0
  %933 = vmatmul.mubr.bf16.gmra.mxu0 %v794
  %v934 = vpop.f32.mrf.mxu0
  %v935 = vadd.f32 0.0, %v934
  %v936 = vpop.f32.mrf.mxu0
  %v937 = vpop.f32.mrf.mxu0
  %v938 = vadd.f32 0.0, %v937
  %v939 = vpop.f32.mrf.mxu0
  %940 = vmatprep.mubr.bf16.mxu0 0
  %941 = vmatmul.mubr.bf16.gmra.mxu0 %v797
  %v942 = vpop.f32.mrf.mxu0
  %v943 = vadd.f32 0.0, %v942
  %v944 = vpop.f32.mrf.mxu0
  %v945 = vpop.f32.mrf.mxu0
  %v946 = vadd.f32 0.0, %v945
  %v947 = vpop.f32.mrf.mxu0
  %948 = vmatprep.mubr.bf16.mxu0 0
  %949 = vmatmul.mubr.bf16.gmra.mxu0 %v800
  %v950 = vpop.f32.mrf.mxu0
  %v951 = vadd.f32 0.0, %v950
  %v952 = vpop.f32.mrf.mxu0
  %v953 = vpop.f32.mrf.mxu0
  %v954 = vadd.f32 0.0, %v953
  %v955 = vpop.f32.mrf.mxu0
  %956 = vmatprep.mubr.bf16.mxu0 0
  %957 = vmatmul.mubr.bf16.gmra.mxu0 %v803
  %v958 = vpop.f32.mrf.mxu0
  %v959 = vadd.f32 0.0, %v958
  %v960 = vpop.f32.mrf.mxu0
  %v961 = vpop.f32.mrf.mxu0
  %v962 = vadd.f32 0.0, %v961
  %v963 = vpop.f32.mrf.mxu0
  %964 = vmatprep.mubr.bf16.mxu0 0
  %965 = vmatmul.mubr.bf16.gmra.mxu0 %v806
  %v966 = vpop.f32.mrf.mxu0
  %v967 = vadd.f32 0.0, %v966
  %v968 = vpop.f32.mrf.mxu0
  %v969 = vpop.f32.mrf.mxu0
  %v970 = vadd.f32 0.0, %v969
  %v971 = vpop.f32.mrf.mxu0
  %972 = vmatprep.mubr.bf16.mxu0 0
  %973 = vmatmul.mubr.bf16.gmra.mxu0 %v809
  %v974 = vpop.f32.mrf.mxu0
  %v975 = vadd.f32 0.0, %v974
  %v976 = vpop.f32.mrf.mxu0
  %v977 = vpop.f32.mrf.mxu0
  %v978 = vadd.f32 0.0, %v977
  %v979 = vpop.f32.mrf.mxu0
  %980 = vmatprep.mubr.bf16.mxu0 0
  %981 = vmatmul.mubr.bf16.gmra.mxu0 %v812
  %v982 = vpop.f32.mrf.mxu0
  %v983 = vadd.f32 0.0, %v982
  %v984 = vpop.f32.mrf.mxu0
  %v985 = vpop.f32.mrf.mxu0
  %v986 = vadd.f32 0.0, %v985
  %v987 = vpop.f32.mrf.mxu0
  %988 = vmatprep.mubr.bf16.mxu0 0
  %989 = vmatmul.mubr.bf16.gmra.mxu0 %v815
  %v990 = vpop.f32.mrf.mxu0
  %v991 = vadd.f32 0.0, %v990
  %v992 = vpop.f32.mrf.mxu0
  %v993 = vpop.f32.mrf.mxu0
  %v994 = vadd.f32 0.0, %v993
  %v995 = vpop.f32.mrf.mxu0
  %996 = vmatprep.mubr.bf16.mxu0 0
  %997 = vmatmul.mubr.bf16.gmra.mxu0 %v818
  %v998 = vpop.f32.mrf.mxu0
  %v999 = vadd.f32 0.0, %v998
  %v1000 = vpop.f32.mrf.mxu0
  %v1001 = vpop.f32.mrf.mxu0
  %v1002 = vadd.f32 0.0, %v1001
  %v1003 = vpop.f32.mrf.mxu0
  %1004 = vdwg.mxu0
  %v1009 = vunpack.c.l.b16 %v723
  %v1010 = vunpack.c.l.b16 %v724
  %v1011 = vunpack.c.l.b16 %v725
  %v1012 = vunpack.c.l.b16 %v726
  %v1013 = vpack.c.b16 %v1010, %v1009
  %v1014 = vpack.c.b16 %v1012, %v1011
  %v1018 = vsel %vm762, %v704, 0
  %v1021 = vsel %vm762, %v705, 0
  %v1024 = vsel %vm762, %v706, 0
  %v1027 = vsel %vm762, %v707, 0
  %v1030 = vsel %vm762, %v708, 0
  %v1033 = vsel %vm762, %v709, 0
  %v1036 = vsel %vm762, %v710, 0
  %v1039 = vsel %vm762, %v711, 0
  %v1042 = vsel %vm762, %v712, 0
  %v1045 = vsel %vm762, %v713, 0
  %v1048 = vsel %vm762, %v714, 0
  %v1051 = vsel %vm762, %v715, 0
  %v1054 = vsel %vm762, %v716, 0
  %v1057 = vsel %vm762, %v717, 0
  %v1060 = vsel %vm762, %v718, 0
  %v1063 = vsel %vm762, %v719, 0
  %v1066 = vsel %vm762, %v720, 0
  %v1069 = vsel %vm762, %v721, 0
  %v1072 = vsel %vm762, %v722, 0
  %1074 = vmatprep.subr.bf16.mxu0 0
  %1075 = vmatpush1.bf16.msra.mxu0 0
  %1076 = vmatprep.subr.bf16.mxu0 0
  %1077 = vmatpush1.bf16.msra.mxu0 0
  %1078 = vmatprep.subr.bf16.mxu0 0
  %1079 = vmatpush1.bf16.msra.mxu0 0
  %1080 = vmatprep.subr.bf16.mxu0 0
  %1081 = vmatpush1.bf16.msra.mxu0 0
  %1082 = vmatprep.subr.bf16.mxu0 0
  %1083 = vmatpush1.bf16.msra.mxu0 0
  %1084 = vmatprep.subr.bf16.mxu0 0
  %1085 = vmatpush1.bf16.msra.mxu0 0
  %1086 = vmatprep.subr.bf16.mxu0 0
  %1087 = vmatpush1.bf16.msra.mxu0 %v1014
  %1088 = vmatprep.subr.bf16.mxu0 0
  %1089 = vmatpush1.bf16.msra.mxu0 %v1013
  %1090 = vmatprep.subr.bf16.mxu0 0
  %1091 = vmatpush2.bf16.msra.mxu0 0
  %1092 = vmatprep.subr.bf16.mxu0 0
  %1093 = vmatpush2.bf16.msra.mxu0 0
  %1094 = vmatprep.subr.bf16.mxu0 0
  %1095 = vmatpush2.bf16.msra.mxu0 0
  %1096 = vmatprep.subr.bf16.mxu0 0
  %1097 = vmatpush2.bf16.msra.mxu0 0
  %1098 = vmatprep.subr.bf16.mxu0 0
  %1099 = vmatpush2.bf16.msra.mxu0 0
  %1100 = vmatprep.subr.bf16.mxu0 0
  %1101 = vmatpush2.bf16.msra.mxu0 0
  %1102 = vmatprep.subr.bf16.mxu0 0
  %1103 = vmatpush2.bf16.msra.mxu0 0
  %1104 = vmatprep.subr.bf16.mxu0 0
  %1105 = vmatpush2.bf16.msra.mxu0 0
  %1106 = vmatprep.mubr.bf16.mxu0 0
  %1107 = vmatmul.mubr.bf16.gmra.mxu0 %v1018
  %v1108 = vpop.f32.mrf.mxu0
  %v1109 = vadd.f32 %v855, %v1108
  %v1110 = vpop.f32.mrf.mxu0
  %v1111 = vpop.f32.mrf.mxu0
  %v1112 = vadd.f32 %v858, %v1111
  %v1113 = vpop.f32.mrf.mxu0
  %1114 = vmatprep.mubr.bf16.mxu0 0
  %1115 = vmatmul.mubr.bf16.gmra.mxu0 %v1021
  %v1116 = vpop.f32.mrf.mxu0
  %v1117 = vadd.f32 %v863, %v1116
  %v1118 = vpop.f32.mrf.mxu0
  %v1119 = vpop.f32.mrf.mxu0
  %v1120 = vadd.f32 %v866, %v1119
  %v1121 = vpop.f32.mrf.mxu0
  %1122 = vmatprep.mubr.bf16.mxu0 0
  %1123 = vmatmul.mubr.bf16.gmra.mxu0 %v1024
  %v1124 = vpop.f32.mrf.mxu0
  %v1125 = vadd.f32 %v871, %v1124
  %v1126 = vpop.f32.mrf.mxu0
  %v1127 = vpop.f32.mrf.mxu0
  %v1128 = vadd.f32 %v874, %v1127
  %v1129 = vpop.f32.mrf.mxu0
  %1130 = vmatprep.mubr.bf16.mxu0 0
  %1131 = vmatmul.mubr.bf16.gmra.mxu0 %v1027
  %v1132 = vpop.f32.mrf.mxu0
  %v1133 = vadd.f32 %v879, %v1132
  %v1134 = vpop.f32.mrf.mxu0
  %v1135 = vpop.f32.mrf.mxu0
  %v1136 = vadd.f32 %v882, %v1135
  %v1137 = vpop.f32.mrf.mxu0
  %1138 = vmatprep.mubr.bf16.mxu0 0
  %1139 = vmatmul.mubr.bf16.gmra.mxu0 %v1030
  %v1140 = vpop.f32.mrf.mxu0
  %v1141 = vadd.f32 %v887, %v1140
  %v1142 = vpop.f32.mrf.mxu0
  %v1143 = vpop.f32.mrf.mxu0
  %v1144 = vadd.f32 %v890, %v1143
  %v1145 = vpop.f32.mrf.mxu0
  %1146 = vmatprep.mubr.bf16.mxu0 0
  %1147 = vmatmul.mubr.bf16.gmra.mxu0 %v1033
  %v1148 = vpop.f32.mrf.mxu0
  %v1149 = vadd.f32 %v895, %v1148
  %v1150 = vpop.f32.mrf.mxu0
  %v1151 = vpop.f32.mrf.mxu0
  %v1152 = vadd.f32 %v898, %v1151
  %v1153 = vpop.f32.mrf.mxu0
  %1154 = vmatprep.mubr.bf16.mxu0 0
  %1155 = vmatmul.mubr.bf16.gmra.mxu0 %v1036
  %v1156 = vpop.f32.mrf.mxu0
  %v1157 = vadd.f32 %v903, %v1156
  %v1158 = vpop.f32.mrf.mxu0
  %v1159 = vpop.f32.mrf.mxu0
  %v1160 = vadd.f32 %v906, %v1159
  %v1161 = vpop.f32.mrf.mxu0
  %1162 = vmatprep.mubr.bf16.mxu0 0
  %1163 = vmatmul.mubr.bf16.gmra.mxu0 %v1039
  %v1164 = vpop.f32.mrf.mxu0
  %v1165 = vadd.f32 %v911, %v1164
  %v1166 = vpop.f32.mrf.mxu0
  %v1167 = vpop.f32.mrf.mxu0
  %v1168 = vadd.f32 %v914, %v1167
  %v1169 = vpop.f32.mrf.mxu0
  %1170 = vmatprep.mubr.bf16.mxu0 0
  %1171 = vmatmul.mubr.bf16.gmra.mxu0 %v1042
  %v1172 = vpop.f32.mrf.mxu0
  %v1173 = vadd.f32 %v919, %v1172
  %v1174 = vpop.f32.mrf.mxu0
  %v1175 = vpop.f32.mrf.mxu0
  %v1176 = vadd.f32 %v922, %v1175
  %v1177 = vpop.f32.mrf.mxu0
  %1178 = vmatprep.mubr.bf16.mxu0 0
  %1179 = vmatmul.mubr.bf16.gmra.mxu0 %v1045
  %v1180 = vpop.f32.mrf.mxu0
  %v1181 = vadd.f32 %v927, %v1180
  %v1182 = vpop.f32.mrf.mxu0
  %v1183 = vpop.f32.mrf.mxu0
  %v1184 = vadd.f32 %v930, %v1183
  %v1185 = vpop.f32.mrf.mxu0
  %1186 = vmatprep.mubr.bf16.mxu0 0
  %1187 = vmatmul.mubr.bf16.gmra.mxu0 %v1048
  %v1188 = vpop.f32.mrf.mxu0
  %v1189 = vadd.f32 %v935, %v1188
  %v1190 = vpop.f32.mrf.mxu0
  %v1191 = vpop.f32.mrf.mxu0
  %v1192 = vadd.f32 %v938, %v1191
  %v1193 = vpop.f32.mrf.mxu0
  %1194 = vmatprep.mubr.bf16.mxu0 0
  %1195 = vmatmul.mubr.bf16.gmra.mxu0 %v1051
  %v1196 = vpop.f32.mrf.mxu0
  %v1197 = vadd.f32 %v943, %v1196
  %v1198 = vpop.f32.mrf.mxu0
  %v1199 = vpop.f32.mrf.mxu0
  %v1200 = vadd.f32 %v946, %v1199
  %v1201 = vpop.f32.mrf.mxu0
  %1202 = vmatprep.mubr.bf16.mxu0 0
  %1203 = vmatmul.mubr.bf16.gmra.mxu0 %v1054
  %v1204 = vpop.f32.mrf.mxu0
  %v1205 = vadd.f32 %v951, %v1204
  %v1206 = vpop.f32.mrf.mxu0
  %v1207 = vpop.f32.mrf.mxu0
  %v1208 = vadd.f32 %v954, %v1207
  %v1209 = vpop.f32.mrf.mxu0
  %1210 = vmatprep.mubr.bf16.mxu0 0
  %1211 = vmatmul.mubr.bf16.gmra.mxu0 %v1057
  %v1212 = vpop.f32.mrf.mxu0
  %v1213 = vadd.f32 %v959, %v1212
  %v1214 = vpop.f32.mrf.mxu0
  %v1215 = vpop.f32.mrf.mxu0
  %v1216 = vadd.f32 %v962, %v1215
  %v1217 = vpop.f32.mrf.mxu0
  %1218 = vmatprep.mubr.bf16.mxu0 0
  %1219 = vmatmul.mubr.bf16.gmra.mxu0 %v1060
  %v1220 = vpop.f32.mrf.mxu0
  %v1221 = vadd.f32 %v967, %v1220
  %v1222 = vpop.f32.mrf.mxu0
  %v1223 = vpop.f32.mrf.mxu0
  %v1224 = vadd.f32 %v970, %v1223
  %v1225 = vpop.f32.mrf.mxu0
  %1226 = vmatprep.mubr.bf16.mxu0 0
  %1227 = vmatmul.mubr.bf16.gmra.mxu0 %v1063
  %v1228 = vpop.f32.mrf.mxu0
  %v1229 = vadd.f32 %v975, %v1228
  %v1230 = vpop.f32.mrf.mxu0
  %v1231 = vpop.f32.mrf.mxu0
  %v1232 = vadd.f32 %v978, %v1231
  %v1233 = vpop.f32.mrf.mxu0
  %1234 = vmatprep.mubr.bf16.mxu0 0
  %1235 = vmatmul.mubr.bf16.gmra.mxu0 %v1066
  %v1236 = vpop.f32.mrf.mxu0
  %v1237 = vadd.f32 %v983, %v1236
  %v1238 = vpop.f32.mrf.mxu0
  %v1239 = vpop.f32.mrf.mxu0
  %v1240 = vadd.f32 %v986, %v1239
  %v1241 = vpop.f32.mrf.mxu0
  %1242 = vmatprep.mubr.bf16.mxu0 0
  %1243 = vmatmul.mubr.bf16.gmra.mxu0 %v1069
  %v1244 = vpop.f32.mrf.mxu0
  %v1245 = vadd.f32 %v991, %v1244
  %v1246 = vpop.f32.mrf.mxu0
  %v1247 = vpop.f32.mrf.mxu0
  %v1248 = vadd.f32 %v994, %v1247
  %v1249 = vpop.f32.mrf.mxu0
  %1250 = vmatprep.mubr.bf16.mxu0 0
  %1251 = vmatmul.mubr.bf16.gmra.mxu0 %v1072
  %v1252 = vpop.f32.mrf.mxu0
  %v1253 = vadd.f32 %v999, %v1252
  %v1254 = vpop.f32.mrf.mxu0
  %v1255 = vpop.f32.mrf.mxu0
  %v1256 = vadd.f32 %v1002, %v1255
  %v1257 = vpop.f32.mrf.mxu0
  %1258 = vdwg.mxu0
  %v1259 = vld [vmem:[%s5] sm:$0x1]
  %v1261 = vlaneseq
  %v1262 = vshrl.u32 %v1261, 7
  %v1263 = vsub.s32 0, %v1262
  %v1264 = vrot.slane %v1259, %v1263
  %v1266 = vadd.f32 %v1109, %v1264
  %v1267 = vadd.f32 %v1112, %v1264
  %v1268 = vadd.f32 %v1117, %v1264
  %v1269 = vadd.f32 %v1120, %v1264
  %v1270 = vadd.f32 %v1125, %v1264
  %v1271 = vadd.f32 %v1128, %v1264
  %v1272 = vadd.f32 %v1133, %v1264
  %v1273 = vadd.f32 %v1136, %v1264
  %v1274 = vadd.f32 %v1141, %v1264
  %v1275 = vadd.f32 %v1144, %v1264
  %v1276 = vadd.f32 %v1149, %v1264
  %v1277 = vadd.f32 %v1152, %v1264
  %v1278 = vadd.f32 %v1157, %v1264
  %v1279 = vadd.f32 %v1160, %v1264
  %v1280 = vadd.f32 %v1165, %v1264
  %v1281 = vadd.f32 %v1168, %v1264
  %v1282 = vadd.f32 %v1173, %v1264
  %v1283 = vadd.f32 %v1176, %v1264
  %v1284 = vadd.f32 %v1181, %v1264
  %v1285 = vadd.f32 %v1184, %v1264
  %v1286 = vadd.f32 %v1189, %v1264
  %v1287 = vadd.f32 %v1192, %v1264
  %v1288 = vadd.f32 %v1197, %v1264
  %v1289 = vadd.f32 %v1200, %v1264
  %v1290 = vadd.f32 %v1205, %v1264
  %v1291 = vadd.f32 %v1208, %v1264
  %v1292 = vadd.f32 %v1213, %v1264
  %v1293 = vadd.f32 %v1216, %v1264
  %v1294 = vadd.f32 %v1221, %v1264
  %v1295 = vadd.f32 %v1224, %v1264
  %v1296 = vadd.f32 %v1229, %v1264
  %v1297 = vadd.f32 %v1232, %v1264
  %v1298 = vadd.f32 %v1237, %v1264
  %v1299 = vadd.f32 %v1240, %v1264
  %v1300 = vadd.f32 %v1245, %v1264
  %v1301 = vadd.f32 %v1248, %v1264
  %v1302 = vadd.f32 %v1253, %v1264
  %v1303 = vadd.f32 %v1256, %v1264
  %v1304 = vmax.f32 %v1266, 0.0
  %v1305 = vmax.f32 %v1267, 0.0
  %v1306 = vmax.f32 %v1268, 0.0
  %v1307 = vmax.f32 %v1269, 0.0
  %v1308 = vmax.f32 %v1270, 0.0
  %v1309 = vmax.f32 %v1271, 0.0
  %v1310 = vmax.f32 %v1272, 0.0
  %v1311 = vmax.f32 %v1273, 0.0
  %v1312 = vmax.f32 %v1274, 0.0
  %v1313 = vmax.f32 %v1275, 0.0
  %v1314 = vmax.f32 %v1276, 0.0
  %v1315 = vmax.f32 %v1277, 0.0
  %v1316 = vmax.f32 %v1278, 0.0
  %v1317 = vmax.f32 %v1279, 0.0
  %v1318 = vmax.f32 %v1280, 0.0
  %v1319 = vmax.f32 %v1281, 0.0
  %v1320 = vmax.f32 %v1282, 0.0
  %v1321 = vmax.f32 %v1283, 0.0
  %v1322 = vmax.f32 %v1284, 0.0
  %v1323 = vmax.f32 %v1285, 0.0
  %v1324 = vmax.f32 %v1286, 0.0
  %v1325 = vmax.f32 %v1287, 0.0
  %v1326 = vmax.f32 %v1288, 0.0
  %v1327 = vmax.f32 %v1289, 0.0
  %v1328 = vmax.f32 %v1290, 0.0
  %v1329 = vmax.f32 %v1291, 0.0
  %v1330 = vmax.f32 %v1292, 0.0
  %v1331 = vmax.f32 %v1293, 0.0
  %v1332 = vmax.f32 %v1294, 0.0
  %v1333 = vmax.f32 %v1295, 0.0
  %v1334 = vmax.f32 %v1296, 0.0
  %v1335 = vmax.f32 %v1297, 0.0
  %v1336 = vmax.f32 %v1298, 0.0
  %v1337 = vmax.f32 %v1299, 0.0
  %v1338 = vmax.f32 %v1300, 0.0
  %v1339 = vmax.f32 %v1301, 0.0
  %v1340 = vmax.f32 %v1302, 0.0
  %v1341 = vmax.f32 %v1303, 0.0
  %v1342 = vpack.c.bf16 %v1305, %v1304
  %v1343 = vpack.c.bf16 %v1307, %v1306
  %v1344 = vpack.c.bf16 %v1309, %v1308
  %v1345 = vpack.c.bf16 %v1311, %v1310
  %v1346 = vpack.c.bf16 %v1313, %v1312
  %v1347 = vpack.c.bf16 %v1315, %v1314
  %v1348 = vpack.c.bf16 %v1317, %v1316
  %v1349 = vpack.c.bf16 %v1319, %v1318
  %v1350 = vpack.c.bf16 %v1321, %v1320
  %v1351 = vpack.c.bf16 %v1323, %v1322
  %v1352 = vpack.c.bf16 %v1325, %v1324
  %v1353 = vpack.c.bf16 %v1327, %v1326
  %v1354 = vpack.c.bf16 %v1329, %v1328
  %v1355 = vpack.c.bf16 %v1331, %v1330
  %v1356 = vpack.c.bf16 %v1333, %v1332
  %v1357 = vpack.c.bf16 %v1335, %v1334
  %v1358 = vpack.c.bf16 %v1337, %v1336
  %v1359 = vpack.c.bf16 %v1339, %v1338
  %v1360 = vpack.c.bf16 %v1341, %v1340
  %v1361 = vld [vmem:[%s6] sm:$0xf]
  %v1362 = vld [vmem:[%s6 + $0x4] sm:$0xf]
  %v1363 = vld [vmem:[%s6 + $0x8] sm:$0xf]
  %v1364 = vld [vmem:[%s6 + $0xc] sm:$0xf]
  %v1365 = vld [vmem:[%s6 + $0x10] sm:$0xf]
  %v1366 = vld [vmem:[%s6 + $0x14] sm:$0xf]
  %v1367 = vld [vmem:[%s6 + $0x18] sm:$0xf]
  %v1368 = vld [vmem:[%s6 + $0x1c] sm:$0xf]
  %v1369 = vld [vmem:[%s6 + $0x20] sm:$0xf]
  %v1370 = vld [vmem:[%s6 + $0x24] sm:$0xf]
  %v1371 = vld [vmem:[%s6 + $0x28] sm:$0xf]
  %v1372 = vld [vmem:[%s6 + $0x2c] sm:$0xf]
  %v1373 = vld [vmem:[%s6 + $0x30] sm:$0xf]
  %v1374 = vld [vmem:[%s6 + $0x34] sm:$0xf]
  %v1375 = vld [vmem:[%s6 + $0x38] sm:$0xf]
  %v1376 = vld [vmem:[%s6 + $0x3c] sm:$0xf]
  %v1377 = vld [vmem:[%s7] sm:$0x1]
  %v1379 = vlaneseq
  %v1380 = vshrl.u32 %v1379, 7
  %v1381 = vsub.s32 0, %v1380
  %v1382 = vrot.slane %v1377, %v1381
  %v1400 = vunpack.c.l.b16 %v1361
  %v1401 = vunpack.c.l.b16 %v1362
  %v1402 = vunpack.c.l.b16 %v1363
  %v1403 = vunpack.c.l.b16 %v1364
  %v1404 = vunpack.c.l.b16 %v1365
  %v1405 = vunpack.c.l.b16 %v1366
  %v1406 = vunpack.c.l.b16 %v1367
  %v1407 = vunpack.c.l.b16 %v1368
  %v1408 = vunpack.c.l.b16 %v1369
  %v1409 = vunpack.c.l.b16 %v1370
  %v1410 = vunpack.c.l.b16 %v1371
  %v1411 = vunpack.c.l.b16 %v1372
  %v1412 = vunpack.c.l.b16 %v1373
  %v1413 = vunpack.c.l.b16 %v1374
  %v1414 = vunpack.c.l.b16 %v1375
  %v1415 = vunpack.c.l.b16 %v1376
  %v1416 = vpack.c.b16 %v1401, %v1400
  %v1417 = vpack.c.b16 %v1403, %v1402
  %v1418 = vpack.c.b16 %v1405, %v1404
  %v1419 = vpack.c.b16 %v1407, %v1406
  %v1420 = vpack.c.b16 %v1409, %v1408
  %v1421 = vpack.c.b16 %v1411, %v1410
  %v1422 = vpack.c.b16 %v1413, %v1412
  %v1423 = vpack.c.b16 %v1415, %v1414
  %1432 = vmatprep.subr.bf16.mxu0 0
  %1433 = vmatpush1.bf16.msra.mxu0 %v1423
  %1434 = vmatprep.subr.bf16.mxu0 0
  %1435 = vmatpush1.bf16.msra.mxu0 %v1422
  %1436 = vmatprep.subr.bf16.mxu0 0
  %1437 = vmatpush1.bf16.msra.mxu0 %v1421
  %1438 = vmatprep.subr.bf16.mxu0 0
  %1439 = vmatpush1.bf16.msra.mxu0 %v1420
  %1440 = vmatprep.subr.bf16.mxu0 0
  %1441 = vmatpush1.bf16.msra.mxu0 %v1419
  %1442 = vmatprep.subr.bf16.mxu0 0
  %1443 = vmatpush1.bf16.msra.mxu0 %v1418
  %1444 = vmatprep.subr.bf16.mxu0 0
  %1445 = vmatpush1.bf16.msra.mxu0 %v1417
  %1446 = vmatprep.subr.bf16.mxu0 0
  %1447 = vmatpush1.bf16.msra.mxu0 %v1416
  %1448 = vmatprep.subr.bf16.mxu0 0
  %1449 = vmatpush2.bf16.msra.mxu0 0
  %1450 = vmatprep.subr.bf16.mxu0 0
  %1451 = vmatpush2.bf16.msra.mxu0 0
  %1452 = vmatprep.subr.bf16.mxu0 0
  %1453 = vmatpush2.bf16.msra.mxu0 0
  %1454 = vmatprep.subr.bf16.mxu0 0
  %1455 = vmatpush2.bf16.msra.mxu0 0
  %1456 = vmatprep.subr.bf16.mxu0 0
  %1457 = vmatpush2.bf16.msra.mxu0 0
  %1458 = vmatprep.subr.bf16.mxu0 0
  %1459 = vmatpush2.bf16.msra.mxu0 0
  %1460 = vmatprep.subr.bf16.mxu0 0
  %1461 = vmatpush2.bf16.msra.mxu0 0
  %1462 = vmatprep.subr.bf16.mxu0 0
  %1463 = vmatpush2.bf16.msra.mxu0 0
  %1464 = vmatprep.mubr.bf16.mxu0 0
  %1465 = vmatmul.mubr.bf16.gmra.mxu0 %v1342
  %v1466 = vpop.f32.mrf.mxu0
  %v1467 = vadd.f32 %v1382, %v1466
  %v1468 = vpop.f32.mrf.mxu0
  %v1469 = vpop.f32.mrf.mxu0
  %v1470 = vadd.f32 %v1382, %v1469
  %v1471 = vpop.f32.mrf.mxu0
  %1472 = vmatprep.mubr.bf16.mxu0 0
  %1473 = vmatmul.mubr.bf16.gmra.mxu0 %v1343
  %v1474 = vpop.f32.mrf.mxu0
  %v1475 = vadd.f32 %v1382, %v1474
  %v1476 = vpop.f32.mrf.mxu0
  %v1477 = vpop.f32.mrf.mxu0
  %v1478 = vadd.f32 %v1382, %v1477
  %v1479 = vpop.f32.mrf.mxu0
  %1480 = vmatprep.mubr.bf16.mxu0 0
  %1481 = vmatmul.mubr.bf16.gmra.mxu0 %v1344
  %v1482 = vpop.f32.mrf.mxu0
  %v1483 = vadd.f32 %v1382, %v1482
  %v1484 = vpop.f32.mrf.mxu0
  %v1485 = vpop.f32.mrf.mxu0
  %v1486 = vadd.f32 %v1382, %v1485
  %v1487 = vpop.f32.mrf.mxu0
  %1488 = vmatprep.mubr.bf16.mxu0 0
  %1489 = vmatmul.mubr.bf16.gmra.mxu0 %v1345
  %v1490 = vpop.f32.mrf.mxu0
  %v1491 = vadd.f32 %v1382, %v1490
  %v1492 = vpop.f32.mrf.mxu0
  %v1493 = vpop.f32.mrf.mxu0
  %v1494 = vadd.f32 %v1382, %v1493
  %v1495 = vpop.f32.mrf.mxu0
  %1496 = vmatprep.mubr.bf16.mxu0 0
  %1497 = vmatmul.mubr.bf16.gmra.mxu0 %v1346
  %v1498 = vpop.f32.mrf.mxu0
  %v1499 = vadd.f32 %v1382, %v1498
  %v1500 = vpop.f32.mrf.mxu0
  %v1501 = vpop.f32.mrf.mxu0
  %v1502 = vadd.f32 %v1382, %v1501
  %v1503 = vpop.f32.mrf.mxu0
  %1504 = vmatprep.mubr.bf16.mxu0 0
  %1505 = vmatmul.mubr.bf16.gmra.mxu0 %v1347
  %v1506 = vpop.f32.mrf.mxu0
  %v1507 = vadd.f32 %v1382, %v1506
  %v1508 = vpop.f32.mrf.mxu0
  %v1509 = vpop.f32.mrf.mxu0
  %v1510 = vadd.f32 %v1382, %v1509
  %v1511 = vpop.f32.mrf.mxu0
  %1512 = vmatprep.mubr.bf16.mxu0 0
  %1513 = vmatmul.mubr.bf16.gmra.mxu0 %v1348
  %v1514 = vpop.f32.mrf.mxu0
  %v1515 = vadd.f32 %v1382, %v1514
  %v1516 = vpop.f32.mrf.mxu0
  %v1517 = vpop.f32.mrf.mxu0
  %v1518 = vadd.f32 %v1382, %v1517
  %v1519 = vpop.f32.mrf.mxu0
  %1520 = vmatprep.mubr.bf16.mxu0 0
  %1521 = vmatmul.mubr.bf16.gmra.mxu0 %v1349
  %v1522 = vpop.f32.mrf.mxu0
  %v1523 = vadd.f32 %v1382, %v1522
  %v1524 = vpop.f32.mrf.mxu0
  %v1525 = vpop.f32.mrf.mxu0
  %v1526 = vadd.f32 %v1382, %v1525
  %v1527 = vpop.f32.mrf.mxu0
  %1528 = vmatprep.mubr.bf16.mxu0 0
  %1529 = vmatmul.mubr.bf16.gmra.mxu0 %v1350
  %v1530 = vpop.f32.mrf.mxu0
  %v1531 = vadd.f32 %v1382, %v1530
  %v1532 = vpop.f32.mrf.mxu0
  %v1533 = vpop.f32.mrf.mxu0
  %v1534 = vadd.f32 %v1382, %v1533
  %v1535 = vpop.f32.mrf.mxu0
  %1536 = vmatprep.mubr.bf16.mxu0 0
  %1537 = vmatmul.mubr.bf16.gmra.mxu0 %v1351
  %v1538 = vpop.f32.mrf.mxu0
  %v1539 = vadd.f32 %v1382, %v1538
  %v1540 = vpop.f32.mrf.mxu0
  %v1541 = vpop.f32.mrf.mxu0
  %v1542 = vadd.f32 %v1382, %v1541
  %v1543 = vpop.f32.mrf.mxu0
  %1544 = vmatprep.mubr.bf16.mxu0 0
  %1545 = vmatmul.mubr.bf16.gmra.mxu0 %v1352
  %v1546 = vpop.f32.mrf.mxu0
  %v1547 = vadd.f32 %v1382, %v1546
  %v1548 = vpop.f32.mrf.mxu0
  %v1549 = vpop.f32.mrf.mxu0
  %v1550 = vadd.f32 %v1382, %v1549
  %v1551 = vpop.f32.mrf.mxu0
  %1552 = vmatprep.mubr.bf16.mxu0 0
  %1553 = vmatmul.mubr.bf16.gmra.mxu0 %v1353
  %v1554 = vpop.f32.mrf.mxu0
  %v1555 = vadd.f32 %v1382, %v1554
  %v1556 = vpop.f32.mrf.mxu0
  %v1557 = vpop.f32.mrf.mxu0
  %v1558 = vadd.f32 %v1382, %v1557
  %v1559 = vpop.f32.mrf.mxu0
  %1560 = vmatprep.mubr.bf16.mxu0 0
  %1561 = vmatmul.mubr.bf16.gmra.mxu0 %v1354
  %v1562 = vpop.f32.mrf.mxu0
  %v1563 = vadd.f32 %v1382, %v1562
  %v1564 = vpop.f32.mrf.mxu0
  %v1565 = vpop.f32.mrf.mxu0
  %v1566 = vadd.f32 %v1382, %v1565
  %v1567 = vpop.f32.mrf.mxu0
  %1568 = vmatprep.mubr.bf16.mxu0 0
  %1569 = vmatmul.mubr.bf16.gmra.mxu0 %v1355
  %v1570 = vpop.f32.mrf.mxu0
  %v1571 = vadd.f32 %v1382, %v1570
  %v1572 = vpop.f32.mrf.mxu0
  %v1573 = vpop.f32.mrf.mxu0
  %v1574 = vadd.f32 %v1382, %v1573
  %v1575 = vpop.f32.mrf.mxu0
  %1576 = vmatprep.mubr.bf16.mxu0 0
  %1577 = vmatmul.mubr.bf16.gmra.mxu0 %v1356
  %v1578 = vpop.f32.mrf.mxu0
  %v1579 = vadd.f32 %v1382, %v1578
  %v1580 = vpop.f32.mrf.mxu0
  %v1581 = vpop.f32.mrf.mxu0
  %v1582 = vadd.f32 %v1382, %v1581
  %v1583 = vpop.f32.mrf.mxu0
  %1584 = vmatprep.mubr.bf16.mxu0 0
  %1585 = vmatmul.mubr.bf16.gmra.mxu0 %v1357
  %v1586 = vpop.f32.mrf.mxu0
  %v1587 = vadd.f32 %v1382, %v1586
  %v1588 = vpop.f32.mrf.mxu0
  %v1589 = vpop.f32.mrf.mxu0
  %v1590 = vadd.f32 %v1382, %v1589
  %v1591 = vpop.f32.mrf.mxu0
  %1592 = vmatprep.mubr.bf16.mxu0 0
  %1593 = vmatmul.mubr.bf16.gmra.mxu0 %v1358
  %v1594 = vpop.f32.mrf.mxu0
  %v1595 = vadd.f32 %v1382, %v1594
  %v1596 = vpop.f32.mrf.mxu0
  %v1597 = vpop.f32.mrf.mxu0
  %v1598 = vadd.f32 %v1382, %v1597
  %v1599 = vpop.f32.mrf.mxu0
  %1600 = vmatprep.mubr.bf16.mxu0 0
  %1601 = vmatmul.mubr.bf16.gmra.mxu0 %v1359
  %v1602 = vpop.f32.mrf.mxu0
  %v1603 = vadd.f32 %v1382, %v1602
  %v1604 = vpop.f32.mrf.mxu0
  %v1605 = vpop.f32.mrf.mxu0
  %v1606 = vadd.f32 %v1382, %v1605
  %v1607 = vpop.f32.mrf.mxu0
  %1608 = vmatprep.mubr.bf16.mxu0 0
  %1609 = vmatmul.mubr.bf16.gmra.mxu0 %v1360
  %v1610 = vpop.f32.mrf.mxu0
  %v1611 = vadd.f32 %v1382, %v1610
  %v1612 = vpop.f32.mrf.mxu0
  %v1613 = vpop.f32.mrf.mxu0
  %v1614 = vadd.f32 %v1382, %v1613
  %v1615 = vpop.f32.mrf.mxu0
  %1616 = vdwg.mxu0
  %v1617 = vlaneseq
  %v1618 = vand.u32 %v1617, 127
  %vm1619 = vcmp.lt.s32.totalorder %v1618, 32
  %v1620 = vmax.f32 %v1467, 0.0
  %v1621 = vmax.f32 %v1470, 0.0
  %v1622 = vmax.f32 %v1475, 0.0
  %v1623 = vmax.f32 %v1478, 0.0
  %v1624 = vmax.f32 %v1483, 0.0
  %v1625 = vmax.f32 %v1486, 0.0
  %v1626 = vmax.f32 %v1491, 0.0
  %v1627 = vmax.f32 %v1494, 0.0
  %v1628 = vmax.f32 %v1499, 0.0
  %v1629 = vmax.f32 %v1502, 0.0
  %v1630 = vmax.f32 %v1507, 0.0
  %v1631 = vmax.f32 %v1510, 0.0
  %v1632 = vmax.f32 %v1515, 0.0
  %v1633 = vmax.f32 %v1518, 0.0
  %v1634 = vmax.f32 %v1523, 0.0
  %v1635 = vmax.f32 %v1526, 0.0
  %v1636 = vmax.f32 %v1531, 0.0
  %v1637 = vmax.f32 %v1534, 0.0
  %v1638 = vmax.f32 %v1539, 0.0
  %v1639 = vmax.f32 %v1542, 0.0
  %v1640 = vmax.f32 %v1547, 0.0
  %v1641 = vmax.f32 %v1550, 0.0
  %v1642 = vmax.f32 %v1555, 0.0
  %v1643 = vmax.f32 %v1558, 0.0
  %v1644 = vmax.f32 %v1563, 0.0
  %v1645 = vmax.f32 %v1566, 0.0
  %v1646 = vmax.f32 %v1571, 0.0
  %v1647 = vmax.f32 %v1574, 0.0
  %v1648 = vmax.f32 %v1579, 0.0
  %v1649 = vmax.f32 %v1582, 0.0
  %v1650 = vmax.f32 %v1587, 0.0
  %v1651 = vmax.f32 %v1590, 0.0
  %v1652 = vmax.f32 %v1595, 0.0
  %v1653 = vmax.f32 %v1598, 0.0
  %v1654 = vmax.f32 %v1603, 0.0
  %v1655 = vmax.f32 %v1606, 0.0
  %v1656 = vmax.f32 %v1611, 0.0
  %v1657 = vmax.f32 %v1614, 0.0
  %v1658 = vsub.f32 0.0, %v1467
  %v1659 = vsub.f32 0.0, %v1470
  %v1660 = vsub.f32 0.0, %v1475
  %v1661 = vsub.f32 0.0, %v1478
  %v1662 = vsub.f32 0.0, %v1483
  %v1663 = vsub.f32 0.0, %v1486
  %v1664 = vsub.f32 0.0, %v1491
  %v1665 = vsub.f32 0.0, %v1494
  %v1666 = vsub.f32 0.0, %v1499
  %v1667 = vsub.f32 0.0, %v1502
  %v1668 = vsub.f32 0.0, %v1507
  %v1669 = vsub.f32 0.0, %v1510
  %v1670 = vsub.f32 0.0, %v1515
  %v1671 = vsub.f32 0.0, %v1518
  %v1672 = vsub.f32 0.0, %v1523
  %v1673 = vsub.f32 0.0, %v1526
  %v1674 = vsub.f32 0.0, %v1531
  %v1675 = vsub.f32 0.0, %v1534
  %v1676 = vsub.f32 0.0, %v1539
  %v1677 = vsub.f32 0.0, %v1542
  %v1678 = vsub.f32 0.0, %v1547
  %v1679 = vsub.f32 0.0, %v1550
  %v1680 = vsub.f32 0.0, %v1555
  %v1681 = vsub.f32 0.0, %v1558
  %v1682 = vsub.f32 0.0, %v1563
  %v1683 = vsub.f32 0.0, %v1566
  %v1684 = vsub.f32 0.0, %v1571
  %v1685 = vsub.f32 0.0, %v1574
  %v1686 = vsub.f32 0.0, %v1579
  %v1687 = vsub.f32 0.0, %v1582
  %v1688 = vsub.f32 0.0, %v1587
  %v1689 = vsub.f32 0.0, %v1590
  %v1690 = vsub.f32 0.0, %v1595
  %v1691 = vsub.f32 0.0, %v1598
  %v1692 = vsub.f32 0.0, %v1603
  %v1693 = vsub.f32 0.0, %v1606
  %v1694 = vsub.f32 0.0, %v1611
  %v1695 = vsub.f32 0.0, %v1614
  %v1696 = vmul.f32 %v1658, 1.442695
  %v1697 = vpow.pop %v1696
  %v1698 = vmul.f32 %v1659, 1.442695
  %v1699 = vpow.pop %v1698
  %v1700 = vmul.f32 %v1660, 1.442695
  %v1701 = vpow.pop %v1700
  %v1702 = vmul.f32 %v1661, 1.442695
  %v1703 = vpow.pop %v1702
  %v1704 = vmul.f32 %v1662, 1.442695
  %v1705 = vpow.pop %v1704
  %v1706 = vmul.f32 %v1663, 1.442695
  %v1707 = vpow.pop %v1706
  %v1708 = vmul.f32 %v1664, 1.442695
  %v1709 = vpow.pop %v1708
  %v1710 = vmul.f32 %v1665, 1.442695
  %v1711 = vpow.pop %v1710
  %v1712 = vmul.f32 %v1666, 1.442695
  %v1713 = vpow.pop %v1712
  %v1714 = vmul.f32 %v1667, 1.442695
  %v1715 = vpow.pop %v1714
  %v1716 = vmul.f32 %v1668, 1.442695
  %v1717 = vpow.pop %v1716
  %v1718 = vmul.f32 %v1669, 1.442695
  %v1719 = vpow.pop %v1718
  %v1720 = vmul.f32 %v1670, 1.442695
  %v1721 = vpow.pop %v1720
  %v1722 = vmul.f32 %v1671, 1.442695
  %v1723 = vpow.pop %v1722
  %v1724 = vmul.f32 %v1672, 1.442695
  %v1725 = vpow.pop %v1724
  %v1726 = vmul.f32 %v1673, 1.442695
  %v1727 = vpow.pop %v1726
  %v1728 = vmul.f32 %v1674, 1.442695
  %v1729 = vpow.pop %v1728
  %v1730 = vmul.f32 %v1675, 1.442695
  %v1731 = vpow.pop %v1730
  %v1732 = vmul.f32 %v1676, 1.442695
  %v1733 = vpow.pop %v1732
  %v1734 = vmul.f32 %v1677, 1.442695
  %v1735 = vpow.pop %v1734
  %v1736 = vmul.f32 %v1678, 1.442695
  %v1737 = vpow.pop %v1736
  %v1738 = vmul.f32 %v1679, 1.442695
  %v1739 = vpow.pop %v1738
  %v1740 = vmul.f32 %v1680, 1.442695
  %v1741 = vpow.pop %v1740
  %v1742 = vmul.f32 %v1681, 1.442695
  %v1743 = vpow.pop %v1742
  %v1744 = vmul.f32 %v1682, 1.442695
  %v1745 = vpow.pop %v1744
  %v1746 = vmul.f32 %v1683, 1.442695
  %v1747 = vpow.pop %v1746
  %v1748 = vmul.f32 %v1684, 1.442695
  %v1749 = vpow.pop %v1748
  %v1750 = vmul.f32 %v1685, 1.442695
  %v1751 = vpow.pop %v1750
  %v1752 = vmul.f32 %v1686, 1.442695
  %v1753 = vpow.pop %v1752
  %v1754 = vmul.f32 %v1687, 1.442695
  %v1755 = vpow.pop %v1754
  %v1756 = vmul.f32 %v1688, 1.442695
  %v1757 = vpow.pop %v1756
  %v1758 = vmul.f32 %v1689, 1.442695
  %v1759 = vpow.pop %v1758
  %v1760 = vmul.f32 %v1690, 1.442695
  %v1761 = vpow.pop %v1760
  %v1762 = vmul.f32 %v1691, 1.442695
  %v1763 = vpow.pop %v1762
  %v1764 = vmul.f32 %v1692, 1.442695
  %v1765 = vpow.pop %v1764
  %v1766 = vmul.f32 %v1693, 1.442695
  %v1767 = vpow.pop %v1766
  %v1768 = vmul.f32 %v1694, 1.442695
  %v1769 = vpow.pop %v1768
  %v1770 = vmul.f32 %v1695, 1.442695
  %v1771 = vpow.pop %v1770
  %v1772 = vadd.f32 %v1697, 1.0
  %v1773 = vadd.f32 %v1699, 1.0
  %v1774 = vadd.f32 %v1701, 1.0
  %v1775 = vadd.f32 %v1703, 1.0
  %v1776 = vadd.f32 %v1705, 1.0
  %v1777 = vadd.f32 %v1707, 1.0
  %v1778 = vadd.f32 %v1709, 1.0
  %v1779 = vadd.f32 %v1711, 1.0
  %v1780 = vadd.f32 %v1713, 1.0
  %v1781 = vadd.f32 %v1715, 1.0
  %v1782 = vadd.f32 %v1717, 1.0
  %v1783 = vadd.f32 %v1719, 1.0
  %v1784 = vadd.f32 %v1721, 1.0
  %v1785 = vadd.f32 %v1723, 1.0
  %v1786 = vadd.f32 %v1725, 1.0
  %v1787 = vadd.f32 %v1727, 1.0
  %v1788 = vadd.f32 %v1729, 1.0
  %v1789 = vadd.f32 %v1731, 1.0
  %v1790 = vadd.f32 %v1733, 1.0
  %v1791 = vadd.f32 %v1735, 1.0
  %v1792 = vadd.f32 %v1737, 1.0
  %v1793 = vadd.f32 %v1739, 1.0
  %v1794 = vadd.f32 %v1741, 1.0
  %v1795 = vadd.f32 %v1743, 1.0
  %v1796 = vadd.f32 %v1745, 1.0
  %v1797 = vadd.f32 %v1747, 1.0
  %v1798 = vadd.f32 %v1749, 1.0
  %v1799 = vadd.f32 %v1751, 1.0
  %v1800 = vadd.f32 %v1753, 1.0
  %v1801 = vadd.f32 %v1755, 1.0
  %v1802 = vadd.f32 %v1757, 1.0
  %v1803 = vadd.f32 %v1759, 1.0
  %v1804 = vadd.f32 %v1761, 1.0
  %v1805 = vadd.f32 %v1763, 1.0
  %v1806 = vadd.f32 %v1765, 1.0
  %v1807 = vadd.f32 %v1767, 1.0
  %v1808 = vadd.f32 %v1769, 1.0
  %v1809 = vadd.f32 %v1771, 1.0
  %v1810 = vrcp.pop %v1772
  %v1811 = vmul.f32 1.0, %v1810
  %v1812 = vrcp.pop %v1773
  %v1813 = vmul.f32 1.0, %v1812
  %v1814 = vrcp.pop %v1774
  %v1815 = vmul.f32 1.0, %v1814
  %v1816 = vrcp.pop %v1775
  %v1817 = vmul.f32 1.0, %v1816
  %v1818 = vrcp.pop %v1776
  %v1819 = vmul.f32 1.0, %v1818
  %v1820 = vrcp.pop %v1777
  %v1821 = vmul.f32 1.0, %v1820
  %v1822 = vrcp.pop %v1778
  %v1823 = vmul.f32 1.0, %v1822
  %v1824 = vrcp.pop %v1779
  %v1825 = vmul.f32 1.0, %v1824
  %v1826 = vrcp.pop %v1780
  %v1827 = vmul.f32 1.0, %v1826
  %v1828 = vrcp.pop %v1781
  %v1829 = vmul.f32 1.0, %v1828
  %v1830 = vrcp.pop %v1782
  %v1831 = vmul.f32 1.0, %v1830
  %v1832 = vrcp.pop %v1783
  %v1833 = vmul.f32 1.0, %v1832
  %v1834 = vrcp.pop %v1784
  %v1835 = vmul.f32 1.0, %v1834
  %v1836 = vrcp.pop %v1785
  %v1837 = vmul.f32 1.0, %v1836
  %v1838 = vrcp.pop %v1786
  %v1839 = vmul.f32 1.0, %v1838
  %v1840 = vrcp.pop %v1787
  %v1841 = vmul.f32 1.0, %v1840
  %v1842 = vrcp.pop %v1788
  %v1843 = vmul.f32 1.0, %v1842
  %v1844 = vrcp.pop %v1789
  %v1845 = vmul.f32 1.0, %v1844
  %v1846 = vrcp.pop %v1790
  %v1847 = vmul.f32 1.0, %v1846
  %v1848 = vrcp.pop %v1791
  %v1849 = vmul.f32 1.0, %v1848
  %v1850 = vrcp.pop %v1792
  %v1851 = vmul.f32 1.0, %v1850
  %v1852 = vrcp.pop %v1793
  %v1853 = vmul.f32 1.0, %v1852
  %v1854 = vrcp.pop %v1794
  %v1855 = vmul.f32 1.0, %v1854
  %v1856 = vrcp.pop %v1795
  %v1857 = vmul.f32 1.0, %v1856
  %v1858 = vrcp.pop %v1796
  %v1859 = vmul.f32 1.0, %v1858
  %v1860 = vrcp.pop %v1797
  %v1861 = vmul.f32 1.0, %v1860
  %v1862 = vrcp.pop %v1798
  %v1863 = vmul.f32 1.0, %v1862
  %v1864 = vrcp.pop %v1799
  %v1865 = vmul.f32 1.0, %v1864
  %v1866 = vrcp.pop %v1800
  %v1867 = vmul.f32 1.0, %v1866
  %v1868 = vrcp.pop %v1801
  %v1869 = vmul.f32 1.0, %v1868
  %v1870 = vrcp.pop %v1802
  %v1871 = vmul.f32 1.0, %v1870
  %v1872 = vrcp.pop %v1803
  %v1873 = vmul.f32 1.0, %v1872
  %v1874 = vrcp.pop %v1804
  %v1875 = vmul.f32 1.0, %v1874
  %v1876 = vrcp.pop %v1805
  %v1877 = vmul.f32 1.0, %v1876
  %v1878 = vrcp.pop %v1806
  %v1879 = vmul.f32 1.0, %v1878
  %v1880 = vrcp.pop %v1807
  %v1881 = vmul.f32 1.0, %v1880
  %v1882 = vrcp.pop %v1808
  %v1883 = vmul.f32 1.0, %v1882
  %v1884 = vrcp.pop %v1809
  %v1885 = vmul.f32 1.0, %v1884
  %v1886 = vsel %vm1619, %v1620, %v1811
  %v1887 = vsel %vm1619, %v1621, %v1813
  %v1888 = vsel %vm1619, %v1622, %v1815
  %v1889 = vsel %vm1619, %v1623, %v1817
  %v1890 = vsel %vm1619, %v1624, %v1819
  %v1891 = vsel %vm1619, %v1625, %v1821
  %v1892 = vsel %vm1619, %v1626, %v1823
  %v1893 = vsel %vm1619, %v1627, %v1825
  %v1894 = vsel %vm1619, %v1628, %v1827
  %v1895 = vsel %vm1619, %v1629, %v1829
  %v1896 = vsel %vm1619, %v1630, %v1831
  %v1897 = vsel %vm1619, %v1631, %v1833
  %v1898 = vsel %vm1619, %v1632, %v1835
  %v1899 = vsel %vm1619, %v1633, %v1837
  %v1900 = vsel %vm1619, %v1634, %v1839
  %v1901 = vsel %vm1619, %v1635, %v1841
  %v1902 = vsel %vm1619, %v1636, %v1843
  %v1903 = vsel %vm1619, %v1637, %v1845
  %v1904 = vsel %vm1619, %v1638, %v1847
  %v1905 = vsel %vm1619, %v1639, %v1849
  %v1906 = vsel %vm1619, %v1640, %v1851
  %v1907 = vsel %vm1619, %v1641, %v1853
  %v1908 = vsel %vm1619, %v1642, %v1855
  %v1909 = vsel %vm1619, %v1643, %v1857
  %v1910 = vsel %vm1619, %v1644, %v1859
  %v1911 = vsel %vm1619, %v1645, %v1861
  %v1912 = vsel %vm1619, %v1646, %v1863
  %v1913 = vsel %vm1619, %v1647, %v1865
  %v1914 = vsel %vm1619, %v1648, %v1867
  %v1915 = vsel %vm1619, %v1649, %v1869
  %v1916 = vsel %vm1619, %v1650, %v1871
  %v1917 = vsel %vm1619, %v1651, %v1873
  %v1918 = vsel %vm1619, %v1652, %v1875
  %v1919 = vsel %vm1619, %v1653, %v1877
  %v1920 = vsel %vm1619, %v1654, %v1879
  %v1921 = vsel %vm1619, %v1655, %v1881
  %v1922 = vsel %vm1619, %v1656, %v1883
  %v1923 = vsel %vm1619, %v1657, %v1885
  %v1924 = vpack.c.bf16 %v1887, %v1886
  %v1925 = vpack.c.bf16 %v1889, %v1888
  %v1926 = vpack.c.bf16 %v1891, %v1890
  %v1927 = vpack.c.bf16 %v1893, %v1892
  %v1928 = vpack.c.bf16 %v1895, %v1894
  %v1929 = vpack.c.bf16 %v1897, %v1896
  %v1930 = vpack.c.bf16 %v1899, %v1898
  %v1931 = vpack.c.bf16 %v1901, %v1900
  %v1932 = vpack.c.bf16 %v1903, %v1902
  %v1933 = vpack.c.bf16 %v1905, %v1904
  %v1934 = vpack.c.bf16 %v1907, %v1906
  %v1935 = vpack.c.bf16 %v1909, %v1908
  %v1936 = vpack.c.bf16 %v1911, %v1910
  %v1937 = vpack.c.bf16 %v1913, %v1912
  %v1938 = vpack.c.bf16 %v1915, %v1914
  %v1939 = vpack.c.bf16 %v1917, %v1916
  %v1940 = vpack.c.bf16 %v1919, %v1918
  %v1941 = vpack.c.bf16 %v1921, %v1920
  %v1942 = vpack.c.bf16 %v1923, %v1922
  %v1943 = vld [vmem:[%s8] sm:$0xf]
  %v1944 = vld [vmem:[%s8 + $0x4] sm:$0xf]
  %v1945 = vld [vmem:[%s8 + $0x8] sm:$0xf]
  %v1946 = vld [vmem:[%s8 + $0xc] sm:$0xf]
  %v1947 = vld [vmem:[%s8 + $0x10] sm:$0xf]
  %v1948 = vld [vmem:[%s8 + $0x14] sm:$0xf]
  %v1949 = vld [vmem:[%s8 + $0x18] sm:$0xf]
  %v1950 = vld [vmem:[%s8 + $0x1c] sm:$0xf]
  %v1951 = vld [vmem:[%s9] sm:$0x1]
  %v1953 = vlaneseq
  %v1954 = vshrl.u32 %v1953, 7
  %v1955 = vsub.s32 0, %v1954
  %v1956 = vrot.slane %v1951, %v1955
  %v1966 = vunpack.c.l.b16 %v1943
  %v1967 = vunpack.c.l.b16 %v1944
  %v1968 = vunpack.c.l.b16 %v1945
  %v1969 = vunpack.c.l.b16 %v1946
  %v1970 = vunpack.c.l.b16 %v1947
  %v1971 = vunpack.c.l.b16 %v1948
  %v1972 = vunpack.c.l.b16 %v1949
  %v1973 = vunpack.c.l.b16 %v1950
  %v1974 = vpack.c.b16 %v1967, %v1966
  %v1975 = vpack.c.b16 %v1969, %v1968
  %v1976 = vpack.c.b16 %v1971, %v1970
  %v1977 = vpack.c.b16 %v1973, %v1972
  %vm1982 = vcmask 523264
  %v1984 = vsel %vm1982, %v1924, 0
  %v1987 = vsel %vm1982, %v1925, 0
  %v1990 = vsel %vm1982, %v1926, 0
  %v1993 = vsel %vm1982, %v1927, 0
  %v1996 = vsel %vm1982, %v1928, 0
  %v1999 = vsel %vm1982, %v1929, 0
  %v2002 = vsel %vm1982, %v1930, 0
  %v2005 = vsel %vm1982, %v1931, 0
  %v2008 = vsel %vm1982, %v1932, 0
  %v2011 = vsel %vm1982, %v1933, 0
  %v2014 = vsel %vm1982, %v1934, 0
  %v2017 = vsel %vm1982, %v1935, 0
  %v2020 = vsel %vm1982, %v1936, 0
  %v2023 = vsel %vm1982, %v1937, 0
  %v2026 = vsel %vm1982, %v1938, 0
  %v2029 = vsel %vm1982, %v1939, 0
  %v2032 = vsel %vm1982, %v1940, 0
  %v2035 = vsel %vm1982, %v1941, 0
  %v2038 = vsel %vm1982, %v1942, 0
  %2040 = vmatprep.subr.bf16.mxu0 0
  %2041 = vmatpush1.bf16.msra.mxu0 0
  %2042 = vmatprep.subr.bf16.mxu0 0
  %2043 = vmatpush1.bf16.msra.mxu0 0
  %2044 = vmatprep.subr.bf16.mxu0 0
  %2045 = vmatpush1.bf16.msra.mxu0 0
  %2046 = vmatprep.subr.bf16.mxu0 0
  %2047 = vmatpush1.bf16.msra.mxu0 0
  %2048 = vmatprep.subr.bf16.mxu0 0
  %2049 = vmatpush1.bf16.msra.mxu0 %v1977
  %2050 = vmatprep.subr.bf16.mxu0 0
  %2051 = vmatpush1.bf16.msra.mxu0 %v1976
  %2052 = vmatprep.subr.bf16.mxu0 0
  %2053 = vmatpush1.bf16.msra.mxu0 %v1975
  %2054 = vmatprep.subr.bf16.mxu0 0
  %2055 = vmatpush1.bf16.msra.mxu0 %v1974
  %2056 = vmatprep.subr.bf16.mxu0 0
  %2057 = vmatpush2.bf16.msra.mxu0 0
  %2058 = vmatprep.subr.bf16.mxu0 0
  %2059 = vmatpush2.bf16.msra.mxu0 0
  %2060 = vmatprep.subr.bf16.mxu0 0
  %2061 = vmatpush2.bf16.msra.mxu0 0
  %2062 = vmatprep.subr.bf16.mxu0 0
  %2063 = vmatpush2.bf16.msra.mxu0 0
  %2064 = vmatprep.subr.bf16.mxu0 0
  %2065 = vmatpush2.bf16.msra.mxu0 0
  %2066 = vmatprep.subr.bf16.mxu0 0
  %2067 = vmatpush2.bf16.msra.mxu0 0
  %2068 = vmatprep.subr.bf16.mxu0 0
  %2069 = vmatpush2.bf16.msra.mxu0 0
  %2070 = vmatprep.subr.bf16.mxu0 0
  %2071 = vmatpush2.bf16.msra.mxu0 0
  %2072 = vmatprep.mubr.bf16.mxu0 0
  %2073 = vmatmul.mubr.bf16.gmra.mxu0 %v1984
  %v2074 = vpop.f32.mrf.mxu0
  %v2075 = vadd.f32 %v1956, %v2074
  %v2076 = vpop.f32.mrf.mxu0
  %v2077 = vpop.f32.mrf.mxu0
  %v2078 = vadd.f32 %v1956, %v2077
  %v2079 = vpop.f32.mrf.mxu0
  %2080 = vmatprep.mubr.bf16.mxu0 0
  %2081 = vmatmul.mubr.bf16.gmra.mxu0 %v1987
  %v2082 = vpop.f32.mrf.mxu0
  %v2083 = vadd.f32 %v1956, %v2082
  %v2084 = vpop.f32.mrf.mxu0
  %v2085 = vpop.f32.mrf.mxu0
  %v2086 = vadd.f32 %v1956, %v2085
  %v2087 = vpop.f32.mrf.mxu0
  %2088 = vmatprep.mubr.bf16.mxu0 0
  %2089 = vmatmul.mubr.bf16.gmra.mxu0 %v1990
  %v2090 = vpop.f32.mrf.mxu0
  %v2091 = vadd.f32 %v1956, %v2090
  %v2092 = vpop.f32.mrf.mxu0
  %v2093 = vpop.f32.mrf.mxu0
  %v2094 = vadd.f32 %v1956, %v2093
  %v2095 = vpop.f32.mrf.mxu0
  %2096 = vmatprep.mubr.bf16.mxu0 0
  %2097 = vmatmul.mubr.bf16.gmra.mxu0 %v1993
  %v2098 = vpop.f32.mrf.mxu0
  %v2099 = vadd.f32 %v1956, %v2098
  %v2100 = vpop.f32.mrf.mxu0
  %v2101 = vpop.f32.mrf.mxu0
  %v2102 = vadd.f32 %v1956, %v2101
  %v2103 = vpop.f32.mrf.mxu0
  %2104 = vmatprep.mubr.bf16.mxu0 0
  %2105 = vmatmul.mubr.bf16.gmra.mxu0 %v1996
  %v2106 = vpop.f32.mrf.mxu0
  %v2107 = vadd.f32 %v1956, %v2106
  %v2108 = vpop.f32.mrf.mxu0
  %v2109 = vpop.f32.mrf.mxu0
  %v2110 = vadd.f32 %v1956, %v2109
  %v2111 = vpop.f32.mrf.mxu0
  %2112 = vmatprep.mubr.bf16.mxu0 0
  %2113 = vmatmul.mubr.bf16.gmra.mxu0 %v1999
  %v2114 = vpop.f32.mrf.mxu0
  %v2115 = vadd.f32 %v1956, %v2114
  %v2116 = vpop.f32.mrf.mxu0
  %v2117 = vpop.f32.mrf.mxu0
  %v2118 = vadd.f32 %v1956, %v2117
  %v2119 = vpop.f32.mrf.mxu0
  %2120 = vmatprep.mubr.bf16.mxu0 0
  %2121 = vmatmul.mubr.bf16.gmra.mxu0 %v2002
  %v2122 = vpop.f32.mrf.mxu0
  %v2123 = vadd.f32 %v1956, %v2122
  %v2124 = vpop.f32.mrf.mxu0
  %v2125 = vpop.f32.mrf.mxu0
  %v2126 = vadd.f32 %v1956, %v2125
  %v2127 = vpop.f32.mrf.mxu0
  %2128 = vmatprep.mubr.bf16.mxu0 0
  %2129 = vmatmul.mubr.bf16.gmra.mxu0 %v2005
  %v2130 = vpop.f32.mrf.mxu0
  %v2131 = vadd.f32 %v1956, %v2130
  %v2132 = vpop.f32.mrf.mxu0
  %v2133 = vpop.f32.mrf.mxu0
  %v2134 = vadd.f32 %v1956, %v2133
  %v2135 = vpop.f32.mrf.mxu0
  %2136 = vmatprep.mubr.bf16.mxu0 0
  %2137 = vmatmul.mubr.bf16.gmra.mxu0 %v2008
  %v2138 = vpop.f32.mrf.mxu0
  %v2139 = vadd.f32 %v1956, %v2138
  %v2140 = vpop.f32.mrf.mxu0
  %v2141 = vpop.f32.mrf.mxu0
  %v2142 = vadd.f32 %v1956, %v2141
  %v2143 = vpop.f32.mrf.mxu0
  %2144 = vmatprep.mubr.bf16.mxu0 0
  %2145 = vmatmul.mubr.bf16.gmra.mxu0 %v2011
  %v2146 = vpop.f32.mrf.mxu0
  %v2147 = vadd.f32 %v1956, %v2146
  %v2148 = vpop.f32.mrf.mxu0
  %v2149 = vpop.f32.mrf.mxu0
  %v2150 = vadd.f32 %v1956, %v2149
  %v2151 = vpop.f32.mrf.mxu0
  %2152 = vmatprep.mubr.bf16.mxu0 0
  %2153 = vmatmul.mubr.bf16.gmra.mxu0 %v2014
  %v2154 = vpop.f32.mrf.mxu0
  %v2155 = vadd.f32 %v1956, %v2154
  %v2156 = vpop.f32.mrf.mxu0
  %v2157 = vpop.f32.mrf.mxu0
  %v2158 = vadd.f32 %v1956, %v2157
  %v2159 = vpop.f32.mrf.mxu0
  %2160 = vmatprep.mubr.bf16.mxu0 0
  %2161 = vmatmul.mubr.bf16.gmra.mxu0 %v2017
  %v2162 = vpop.f32.mrf.mxu0
  %v2163 = vadd.f32 %v1956, %v2162
  %v2164 = vpop.f32.mrf.mxu0
  %v2165 = vpop.f32.mrf.mxu0
  %v2166 = vadd.f32 %v1956, %v2165
  %v2167 = vpop.f32.mrf.mxu0
  %2168 = vmatprep.mubr.bf16.mxu0 0
  %2169 = vmatmul.mubr.bf16.gmra.mxu0 %v2020
  %v2170 = vpop.f32.mrf.mxu0
  %v2171 = vadd.f32 %v1956, %v2170
  %v2172 = vpop.f32.mrf.mxu0
  %v2173 = vpop.f32.mrf.mxu0
  %v2174 = vadd.f32 %v1956, %v2173
  %v2175 = vpop.f32.mrf.mxu0
  %2176 = vmatprep.mubr.bf16.mxu0 0
  %2177 = vmatmul.mubr.bf16.gmra.mxu0 %v2023
  %v2178 = vpop.f32.mrf.mxu0
  %v2179 = vadd.f32 %v1956, %v2178
  %v2180 = vpop.f32.mrf.mxu0
  %v2181 = vpop.f32.mrf.mxu0
  %v2182 = vadd.f32 %v1956, %v2181
  %v2183 = vpop.f32.mrf.mxu0
  %2184 = vmatprep.mubr.bf16.mxu0 0
  %2185 = vmatmul.mubr.bf16.gmra.mxu0 %v2026
  %v2186 = vpop.f32.mrf.mxu0
  %v2187 = vadd.f32 %v1956, %v2186
  %v2188 = vpop.f32.mrf.mxu0
  %v2189 = vpop.f32.mrf.mxu0
  %v2190 = vadd.f32 %v1956, %v2189
  %v2191 = vpop.f32.mrf.mxu0
  %2192 = vmatprep.mubr.bf16.mxu0 0
  %2193 = vmatmul.mubr.bf16.gmra.mxu0 %v2029
  %v2194 = vpop.f32.mrf.mxu0
  %v2195 = vadd.f32 %v1956, %v2194
  %v2196 = vpop.f32.mrf.mxu0
  %v2197 = vpop.f32.mrf.mxu0
  %v2198 = vadd.f32 %v1956, %v2197
  %v2199 = vpop.f32.mrf.mxu0
  %2200 = vmatprep.mubr.bf16.mxu0 0
  %2201 = vmatmul.mubr.bf16.gmra.mxu0 %v2032
  %v2202 = vpop.f32.mrf.mxu0
  %v2203 = vadd.f32 %v1956, %v2202
  %v2204 = vpop.f32.mrf.mxu0
  %v2205 = vpop.f32.mrf.mxu0
  %v2206 = vadd.f32 %v1956, %v2205
  %v2207 = vpop.f32.mrf.mxu0
  %2208 = vmatprep.mubr.bf16.mxu0 0
  %2209 = vmatmul.mubr.bf16.gmra.mxu0 %v2035
  %v2210 = vpop.f32.mrf.mxu0
  %v2211 = vadd.f32 %v1956, %v2210
  %v2212 = vpop.f32.mrf.mxu0
  %v2213 = vpop.f32.mrf.mxu0
  %v2214 = vadd.f32 %v1956, %v2213
  %v2215 = vpop.f32.mrf.mxu0
  %2216 = vmatprep.mubr.bf16.mxu0 0
  %2217 = vmatmul.mubr.bf16.gmra.mxu0 %v2038
  %v2218 = vpop.f32.mrf.mxu0
  %v2219 = vadd.f32 %v1956, %v2218
  %v2220 = vpop.f32.mrf.mxu0
  %v2221 = vpop.f32.mrf.mxu0
  %v2222 = vadd.f32 %v1956, %v2221
  %v2223 = vpop.f32.mrf.mxu0
  %2224 = vdwg.mxu0
  %v2225 = vmax.f32 %v2075, 0.0
  %v2226 = vmax.f32 %v2078, 0.0
  %v2227 = vmax.f32 %v2083, 0.0
  %v2228 = vmax.f32 %v2086, 0.0
  %v2229 = vmax.f32 %v2091, 0.0
  %v2230 = vmax.f32 %v2094, 0.0
  %v2231 = vmax.f32 %v2099, 0.0
  %v2232 = vmax.f32 %v2102, 0.0
  %v2233 = vmax.f32 %v2107, 0.0
  %v2234 = vmax.f32 %v2110, 0.0
  %v2235 = vmax.f32 %v2115, 0.0
  %v2236 = vmax.f32 %v2118, 0.0
  %v2237 = vmax.f32 %v2123, 0.0
  %v2238 = vmax.f32 %v2126, 0.0
  %v2239 = vmax.f32 %v2131, 0.0
  %v2240 = vmax.f32 %v2134, 0.0
  %v2241 = vmax.f32 %v2139, 0.0
  %v2242 = vmax.f32 %v2142, 0.0
  %v2243 = vmax.f32 %v2147, 0.0
  %v2244 = vmax.f32 %v2150, 0.0
  %v2245 = vmax.f32 %v2155, 0.0
  %v2246 = vmax.f32 %v2158, 0.0
  %v2247 = vmax.f32 %v2163, 0.0
  %v2248 = vmax.f32 %v2166, 0.0
  %v2249 = vmax.f32 %v2171, 0.0
  %v2250 = vmax.f32 %v2174, 0.0
  %v2251 = vmax.f32 %v2179, 0.0
  %v2252 = vmax.f32 %v2182, 0.0
  %v2253 = vmax.f32 %v2187, 0.0
  %v2254 = vmax.f32 %v2190, 0.0
  %v2255 = vmax.f32 %v2195, 0.0
  %v2256 = vmax.f32 %v2198, 0.0
  %v2257 = vmax.f32 %v2203, 0.0
  %v2258 = vmax.f32 %v2206, 0.0
  %v2259 = vmax.f32 %v2211, 0.0
  %v2260 = vmax.f32 %v2214, 0.0
  %v2261 = vmax.f32 %v2219, 0.0
  %v2262 = vmax.f32 %v2222, 0.0
  %v2263 = vld [vmem:[%s10] sm:$0x1]
  %v2265 = vlaneseq
  %v2266 = vshrl.u32 %v2265, 7
  %v2267 = vsub.s32 0, %v2266
  %v2268 = vrot.slane %v2263, %v2267
  %v2270 = vmul.f32 %v2225, %v2268
  %v2271 = vmul.f32 %v2226, %v2268
  %v2272 = vmul.f32 %v2227, %v2268
  %v2273 = vmul.f32 %v2228, %v2268
  %v2274 = vmul.f32 %v2229, %v2268
  %v2275 = vmul.f32 %v2230, %v2268
  %v2276 = vmul.f32 %v2231, %v2268
  %v2277 = vmul.f32 %v2232, %v2268
  %v2278 = vmul.f32 %v2233, %v2268
  %v2279 = vmul.f32 %v2234, %v2268
  %v2280 = vmul.f32 %v2235, %v2268
  %v2281 = vmul.f32 %v2236, %v2268
  %v2282 = vmul.f32 %v2237, %v2268
  %v2283 = vmul.f32 %v2238, %v2268
  %v2284 = vmul.f32 %v2239, %v2268
  %v2285 = vmul.f32 %v2240, %v2268
  %v2286 = vmul.f32 %v2241, %v2268
  %v2287 = vmul.f32 %v2242, %v2268
  %v2288 = vmul.f32 %v2243, %v2268
  %v2289 = vmul.f32 %v2244, %v2268
  %v2290 = vmul.f32 %v2245, %v2268
  %v2291 = vmul.f32 %v2246, %v2268
  %v2292 = vmul.f32 %v2247, %v2268
  %v2293 = vmul.f32 %v2248, %v2268
  %v2294 = vmul.f32 %v2249, %v2268
  %v2295 = vmul.f32 %v2250, %v2268
  %v2296 = vmul.f32 %v2251, %v2268
  %v2297 = vmul.f32 %v2252, %v2268
  %v2298 = vmul.f32 %v2253, %v2268
  %v2299 = vmul.f32 %v2254, %v2268
  %v2300 = vmul.f32 %v2255, %v2268
  %v2301 = vmul.f32 %v2256, %v2268
  %v2302 = vmul.f32 %v2257, %v2268
  %v2303 = vmul.f32 %v2258, %v2268
  %v2304 = vmul.f32 %v2259, %v2268
  %v2305 = vmul.f32 %v2260, %v2268
  %v2306 = vmul.f32 %v2261, %v2268
  %v2307 = vmul.f32 %v2262, %v2268
  %vm2308 = vcmask 130048
  %v2309 = vsel %vm2308, %v2270, 0.0
  %2310 = vadd.xlane.f32.xlu0 %v2309
  %v2311 = vpop.xlane.xlu0 %2310
  %v2312 = vsel %vm2308, %v2271, 0.0
  %2313 = vadd.xlane.f32.xlu0 %v2312
  %v2314 = vpop.xlane.xlu0 %2313
  %v2315 = vsel %vm2308, %v2272, 0.0
  %2316 = vadd.xlane.f32.xlu0 %v2315
  %v2317 = vpop.xlane.xlu0 %2316
  %v2318 = vsel %vm2308, %v2273, 0.0
  %2319 = vadd.xlane.f32.xlu0 %v2318
  %v2320 = vpop.xlane.xlu0 %2319
  %v2321 = vsel %vm2308, %v2274, 0.0
  %2322 = vadd.xlane.f32.xlu0 %v2321
  %v2323 = vpop.xlane.xlu0 %2322
  %v2324 = vsel %vm2308, %v2275, 0.0
  %2325 = vadd.xlane.f32.xlu0 %v2324
  %v2326 = vpop.xlane.xlu0 %2325
  %v2327 = vsel %vm2308, %v2276, 0.0
  %2328 = vadd.xlane.f32.xlu0 %v2327
  %v2329 = vpop.xlane.xlu0 %2328
  %v2330 = vsel %vm2308, %v2277, 0.0
  %2331 = vadd.xlane.f32.xlu0 %v2330
  %v2332 = vpop.xlane.xlu0 %2331
  %v2333 = vsel %vm2308, %v2278, 0.0
  %2334 = vadd.xlane.f32.xlu0 %v2333
  %v2335 = vpop.xlane.xlu0 %2334
  %v2336 = vsel %vm2308, %v2279, 0.0
  %2337 = vadd.xlane.f32.xlu0 %v2336
  %v2338 = vpop.xlane.xlu0 %2337
  %v2339 = vsel %vm2308, %v2280, 0.0
  %2340 = vadd.xlane.f32.xlu0 %v2339
  %v2341 = vpop.xlane.xlu0 %2340
  %v2342 = vsel %vm2308, %v2281, 0.0
  %2343 = vadd.xlane.f32.xlu0 %v2342
  %v2344 = vpop.xlane.xlu0 %2343
  %v2345 = vsel %vm2308, %v2282, 0.0
  %2346 = vadd.xlane.f32.xlu0 %v2345
  %v2347 = vpop.xlane.xlu0 %2346
  %v2348 = vsel %vm2308, %v2283, 0.0
  %2349 = vadd.xlane.f32.xlu0 %v2348
  %v2350 = vpop.xlane.xlu0 %2349
  %v2351 = vsel %vm2308, %v2284, 0.0
  %2352 = vadd.xlane.f32.xlu0 %v2351
  %v2353 = vpop.xlane.xlu0 %2352
  %v2354 = vsel %vm2308, %v2285, 0.0
  %2355 = vadd.xlane.f32.xlu0 %v2354
  %v2356 = vpop.xlane.xlu0 %2355
  %v2357 = vsel %vm2308, %v2286, 0.0
  %2358 = vadd.xlane.f32.xlu0 %v2357
  %v2359 = vpop.xlane.xlu0 %2358
  %v2360 = vsel %vm2308, %v2287, 0.0
  %2361 = vadd.xlane.f32.xlu0 %v2360
  %v2362 = vpop.xlane.xlu0 %2361
  %v2363 = vsel %vm2308, %v2288, 0.0
  %2364 = vadd.xlane.f32.xlu0 %v2363
  %v2365 = vpop.xlane.xlu0 %2364
  %v2366 = vsel %vm2308, %v2289, 0.0
  %2367 = vadd.xlane.f32.xlu0 %v2366
  %v2368 = vpop.xlane.xlu0 %2367
  %v2369 = vsel %vm2308, %v2290, 0.0
  %2370 = vadd.xlane.f32.xlu0 %v2369
  %v2371 = vpop.xlane.xlu0 %2370
  %v2372 = vsel %vm2308, %v2291, 0.0
  %2373 = vadd.xlane.f32.xlu0 %v2372
  %v2374 = vpop.xlane.xlu0 %2373
  %v2375 = vsel %vm2308, %v2292, 0.0
  %2376 = vadd.xlane.f32.xlu0 %v2375
  %v2377 = vpop.xlane.xlu0 %2376
  %v2378 = vsel %vm2308, %v2293, 0.0
  %2379 = vadd.xlane.f32.xlu0 %v2378
  %v2380 = vpop.xlane.xlu0 %2379
  %v2381 = vsel %vm2308, %v2294, 0.0
  %2382 = vadd.xlane.f32.xlu0 %v2381
  %v2383 = vpop.xlane.xlu0 %2382
  %v2384 = vsel %vm2308, %v2295, 0.0
  %2385 = vadd.xlane.f32.xlu0 %v2384
  %v2386 = vpop.xlane.xlu0 %2385
  %v2387 = vsel %vm2308, %v2296, 0.0
  %2388 = vadd.xlane.f32.xlu0 %v2387
  %v2389 = vpop.xlane.xlu0 %2388
  %v2390 = vsel %vm2308, %v2297, 0.0
  %2391 = vadd.xlane.f32.xlu0 %v2390
  %v2392 = vpop.xlane.xlu0 %2391
  %v2393 = vsel %vm2308, %v2298, 0.0
  %2394 = vadd.xlane.f32.xlu0 %v2393
  %v2395 = vpop.xlane.xlu0 %2394
  %v2396 = vsel %vm2308, %v2299, 0.0
  %2397 = vadd.xlane.f32.xlu0 %v2396
  %v2398 = vpop.xlane.xlu0 %2397
  %v2399 = vsel %vm2308, %v2300, 0.0
  %2400 = vadd.xlane.f32.xlu0 %v2399
  %v2401 = vpop.xlane.xlu0 %2400
  %v2402 = vsel %vm2308, %v2301, 0.0
  %2403 = vadd.xlane.f32.xlu0 %v2402
  %v2404 = vpop.xlane.xlu0 %2403
  %v2405 = vsel %vm2308, %v2302, 0.0
  %2406 = vadd.xlane.f32.xlu0 %v2405
  %v2407 = vpop.xlane.xlu0 %2406
  %v2408 = vsel %vm2308, %v2303, 0.0
  %2409 = vadd.xlane.f32.xlu0 %v2408
  %v2410 = vpop.xlane.xlu0 %2409
  %v2411 = vsel %vm2308, %v2304, 0.0
  %2412 = vadd.xlane.f32.xlu0 %v2411
  %v2413 = vpop.xlane.xlu0 %2412
  %v2414 = vsel %vm2308, %v2305, 0.0
  %2415 = vadd.xlane.f32.xlu0 %v2414
  %v2416 = vpop.xlane.xlu0 %2415
  %v2417 = vsel %vm2308, %v2306, 0.0
  %2418 = vadd.xlane.f32.xlu0 %v2417
  %v2419 = vpop.xlane.xlu0 %2418
  %v2420 = vsel %vm2308, %v2307, 0.0
  %2421 = vadd.xlane.f32.xlu0 %v2420
  %v2422 = vpop.xlane.xlu0 %2421
  %v2423 = vld [vmem:[#allocation2] sm:$0x1]
  %v2425 = vlaneseq
  %v2426 = vshrl.u32 %v2425, 7
  %v2427 = vsub.s32 0, %v2426
  %v2428 = vrot.slane %v2423, %v2427
  %v2430 = vadd.f32 %v2311, %v2428
  %v2431 = vadd.f32 %v2314, %v2428
  %v2432 = vadd.f32 %v2317, %v2428
  %v2433 = vadd.f32 %v2320, %v2428
  %v2434 = vadd.f32 %v2323, %v2428
  %v2435 = vadd.f32 %v2326, %v2428
  %v2436 = vadd.f32 %v2329, %v2428
  %v2437 = vadd.f32 %v2332, %v2428
  %v2438 = vadd.f32 %v2335, %v2428
  %v2439 = vadd.f32 %v2338, %v2428
  %v2440 = vadd.f32 %v2341, %v2428
  %v2441 = vadd.f32 %v2344, %v2428
  %v2442 = vadd.f32 %v2347, %v2428
  %v2443 = vadd.f32 %v2350, %v2428
  %v2444 = vadd.f32 %v2353, %v2428
  %v2445 = vadd.f32 %v2356, %v2428
  %v2446 = vadd.f32 %v2359, %v2428
  %v2447 = vadd.f32 %v2362, %v2428
  %v2448 = vadd.f32 %v2365, %v2428
  %v2449 = vadd.f32 %v2368, %v2428
  %v2450 = vadd.f32 %v2371, %v2428
  %v2451 = vadd.f32 %v2374, %v2428
  %v2452 = vadd.f32 %v2377, %v2428
  %v2453 = vadd.f32 %v2380, %v2428
  %v2454 = vadd.f32 %v2383, %v2428
  %v2455 = vadd.f32 %v2386, %v2428
  %v2456 = vadd.f32 %v2389, %v2428
  %v2457 = vadd.f32 %v2392, %v2428
  %v2458 = vadd.f32 %v2395, %v2428
  %v2459 = vadd.f32 %v2398, %v2428
  %v2460 = vadd.f32 %v2401, %v2428
  %v2461 = vadd.f32 %v2404, %v2428
  %v2462 = vadd.f32 %v2407, %v2428
  %v2463 = vadd.f32 %v2410, %v2428
  %v2464 = vadd.f32 %v2413, %v2428
  %v2465 = vadd.f32 %v2416, %v2428
  %v2466 = vadd.f32 %v2419, %v2428
  %v2467 = vadd.f32 %v2422, %v2428
  %v2468 = vsub.f32 0.0, %v2430
  %v2469 = vsub.f32 0.0, %v2431
  %v2470 = vsub.f32 0.0, %v2432
  %v2471 = vsub.f32 0.0, %v2433
  %v2472 = vsub.f32 0.0, %v2434
  %v2473 = vsub.f32 0.0, %v2435
  %v2474 = vsub.f32 0.0, %v2436
  %v2475 = vsub.f32 0.0, %v2437
  %v2476 = vsub.f32 0.0, %v2438
  %v2477 = vsub.f32 0.0, %v2439
  %v2478 = vsub.f32 0.0, %v2440
  %v2479 = vsub.f32 0.0, %v2441
  %v2480 = vsub.f32 0.0, %v2442
  %v2481 = vsub.f32 0.0, %v2443
  %v2482 = vsub.f32 0.0, %v2444
  %v2483 = vsub.f32 0.0, %v2445
  %v2484 = vsub.f32 0.0, %v2446
  %v2485 = vsub.f32 0.0, %v2447
  %v2486 = vsub.f32 0.0, %v2448
  %v2487 = vsub.f32 0.0, %v2449
  %v2488 = vsub.f32 0.0, %v2450
  %v2489 = vsub.f32 0.0, %v2451
  %v2490 = vsub.f32 0.0, %v2452
  %v2491 = vsub.f32 0.0, %v2453
  %v2492 = vsub.f32 0.0, %v2454
  %v2493 = vsub.f32 0.0, %v2455
  %v2494 = vsub.f32 0.0, %v2456
  %v2495 = vsub.f32 0.0, %v2457
  %v2496 = vsub.f32 0.0, %v2458
  %v2497 = vsub.f32 0.0, %v2459
  %v2498 = vsub.f32 0.0, %v2460
  %v2499 = vsub.f32 0.0, %v2461
  %v2500 = vsub.f32 0.0, %v2462
  %v2501 = vsub.f32 0.0, %v2463
  %v2502 = vsub.f32 0.0, %v2464
  %v2503 = vsub.f32 0.0, %v2465
  %v2504 = vsub.f32 0.0, %v2466
  %v2505 = vsub.f32 0.0, %v2467
  %v2506 = vmul.f32 %v2468, 1.442695
  %v2507 = vpow.pop %v2506
  %v2508 = vmul.f32 %v2469, 1.442695
  %v2509 = vpow.pop %v2508
  %v2510 = vmul.f32 %v2470, 1.442695
  %v2511 = vpow.pop %v2510
  %v2512 = vmul.f32 %v2471, 1.442695
  %v2513 = vpow.pop %v2512
  %v2514 = vmul.f32 %v2472, 1.442695
  %v2515 = vpow.pop %v2514
  %v2516 = vmul.f32 %v2473, 1.442695
  %v2517 = vpow.pop %v2516
  %v2518 = vmul.f32 %v2474, 1.442695
  %v2519 = vpow.pop %v2518
  %v2520 = vmul.f32 %v2475, 1.442695
  %v2521 = vpow.pop %v2520
  %v2522 = vmul.f32 %v2476, 1.442695
  %v2523 = vpow.pop %v2522
  %v2524 = vmul.f32 %v2477, 1.442695
  %v2525 = vpow.pop %v2524
  %v2526 = vmul.f32 %v2478, 1.442695
  %v2527 = vpow.pop %v2526
  %v2528 = vmul.f32 %v2479, 1.442695
  %v2529 = vpow.pop %v2528
  %v2530 = vmul.f32 %v2480, 1.442695
  %v2531 = vpow.pop %v2530
  %v2532 = vmul.f32 %v2481, 1.442695
  %v2533 = vpow.pop %v2532
  %v2534 = vmul.f32 %v2482, 1.442695
  %v2535 = vpow.pop %v2534
  %v2536 = vmul.f32 %v2483, 1.442695
  %v2537 = vpow.pop %v2536
  %v2538 = vmul.f32 %v2484, 1.442695
  %v2539 = vpow.pop %v2538
  %v2540 = vmul.f32 %v2485, 1.442695
  %v2541 = vpow.pop %v2540
  %v2542 = vmul.f32 %v2486, 1.442695
  %v2543 = vpow.pop %v2542
  %v2544 = vmul.f32 %v2487, 1.442695
  %v2545 = vpow.pop %v2544
  %v2546 = vmul.f32 %v2488, 1.442695
  %v2547 = vpow.pop %v2546
  %v2548 = vmul.f32 %v2489, 1.442695
  %v2549 = vpow.pop %v2548
  %v2550 = vmul.f32 %v2490, 1.442695
  %v2551 = vpow.pop %v2550
  %v2552 = vmul.f32 %v2491, 1.442695
  %v2553 = vpow.pop %v2552
  %v2554 = vmul.f32 %v2492, 1.442695
  %v2555 = vpow.pop %v2554
  %v2556 = vmul.f32 %v2493, 1.442695
  %v2557 = vpow.pop %v2556
  %v2558 = vmul.f32 %v2494, 1.442695
  %v2559 = vpow.pop %v2558
  %v2560 = vmul.f32 %v2495, 1.442695
  %v2561 = vpow.pop %v2560
  %v2562 = vmul.f32 %v2496, 1.442695
  %v2563 = vpow.pop %v2562
  %v2564 = vmul.f32 %v2497, 1.442695
  %v2565 = vpow.pop %v2564
  %v2566 = vmul.f32 %v2498, 1.442695
  %v2567 = vpow.pop %v2566
  %v2568 = vmul.f32 %v2499, 1.442695
  %v2569 = vpow.pop %v2568
  %v2570 = vmul.f32 %v2500, 1.442695
  %v2571 = vpow.pop %v2570
  %v2572 = vmul.f32 %v2501, 1.442695
  %v2573 = vpow.pop %v2572
  %v2574 = vmul.f32 %v2502, 1.442695
  %v2575 = vpow.pop %v2574
  %v2576 = vmul.f32 %v2503, 1.442695
  %v2577 = vpow.pop %v2576
  %v2578 = vmul.f32 %v2504, 1.442695
  %v2579 = vpow.pop %v2578
  %v2580 = vmul.f32 %v2505, 1.442695
  %v2581 = vpow.pop %v2580
  %v2582 = vadd.f32 %v2507, 1.0
  %v2583 = vadd.f32 %v2509, 1.0
  %v2584 = vadd.f32 %v2511, 1.0
  %v2585 = vadd.f32 %v2513, 1.0
  %v2586 = vadd.f32 %v2515, 1.0
  %v2587 = vadd.f32 %v2517, 1.0
  %v2588 = vadd.f32 %v2519, 1.0
  %v2589 = vadd.f32 %v2521, 1.0
  %v2590 = vadd.f32 %v2523, 1.0
  %v2591 = vadd.f32 %v2525, 1.0
  %v2592 = vadd.f32 %v2527, 1.0
  %v2593 = vadd.f32 %v2529, 1.0
  %v2594 = vadd.f32 %v2531, 1.0
  %v2595 = vadd.f32 %v2533, 1.0
  %v2596 = vadd.f32 %v2535, 1.0
  %v2597 = vadd.f32 %v2537, 1.0
  %v2598 = vadd.f32 %v2539, 1.0
  %v2599 = vadd.f32 %v2541, 1.0
  %v2600 = vadd.f32 %v2543, 1.0
  %v2601 = vadd.f32 %v2545, 1.0
  %v2602 = vadd.f32 %v2547, 1.0
  %v2603 = vadd.f32 %v2549, 1.0
  %v2604 = vadd.f32 %v2551, 1.0
  %v2605 = vadd.f32 %v2553, 1.0
  %v2606 = vadd.f32 %v2555, 1.0
  %v2607 = vadd.f32 %v2557, 1.0
  %v2608 = vadd.f32 %v2559, 1.0
  %v2609 = vadd.f32 %v2561, 1.0
  %v2610 = vadd.f32 %v2563, 1.0
  %v2611 = vadd.f32 %v2565, 1.0
  %v2612 = vadd.f32 %v2567, 1.0
  %v2613 = vadd.f32 %v2569, 1.0
  %v2614 = vadd.f32 %v2571, 1.0
  %v2615 = vadd.f32 %v2573, 1.0
  %v2616 = vadd.f32 %v2575, 1.0
  %v2617 = vadd.f32 %v2577, 1.0
  %v2618 = vadd.f32 %v2579, 1.0
  %v2619 = vadd.f32 %v2581, 1.0
  %v2620 = vrcp.pop %v2582
  %v2621 = vmul.f32 1.0, %v2620
  %v2622 = vrcp.pop %v2583
  %v2623 = vmul.f32 1.0, %v2622
  %v2624 = vrcp.pop %v2584
  %v2625 = vmul.f32 1.0, %v2624
  %v2626 = vrcp.pop %v2585
  %v2627 = vmul.f32 1.0, %v2626
  %v2628 = vrcp.pop %v2586
  %v2629 = vmul.f32 1.0, %v2628
  %v2630 = vrcp.pop %v2587
  %v2631 = vmul.f32 1.0, %v2630
  %v2632 = vrcp.pop %v2588
  %v2633 = vmul.f32 1.0, %v2632
  %v2634 = vrcp.pop %v2589
  %v2635 = vmul.f32 1.0, %v2634
  %v2636 = vrcp.pop %v2590
  %v2637 = vmul.f32 1.0, %v2636
  %v2638 = vrcp.pop %v2591
  %v2639 = vmul.f32 1.0, %v2638
  %v2640 = vrcp.pop %v2592
  %v2641 = vmul.f32 1.0, %v2640
  %v2642 = vrcp.pop %v2593
  %v2643 = vmul.f32 1.0, %v2642
  %v2644 = vrcp.pop %v2594
  %v2645 = vmul.f32 1.0, %v2644
  %v2646 = vrcp.pop %v2595
  %v2647 = vmul.f32 1.0, %v2646
  %v2648 = vrcp.pop %v2596
  %v2649 = vmul.f32 1.0, %v2648
  %v2650 = vrcp.pop %v2597
  %v2651 = vmul.f32 1.0, %v2650
  %v2652 = vrcp.pop %v2598
  %v2653 = vmul.f32 1.0, %v2652
  %v2654 = vrcp.pop %v2599
  %v2655 = vmul.f32 1.0, %v2654
  %v2656 = vrcp.pop %v2600
  %v2657 = vmul.f32 1.0, %v2656
  %v2658 = vrcp.pop %v2601
  %v2659 = vmul.f32 1.0, %v2658
  %v2660 = vrcp.pop %v2602
  %v2661 = vmul.f32 1.0, %v2660
  %v2662 = vrcp.pop %v2603
  %v2663 = vmul.f32 1.0, %v2662
  %v2664 = vrcp.pop %v2604
  %v2665 = vmul.f32 1.0, %v2664
  %v2666 = vrcp.pop %v2605
  %v2667 = vmul.f32 1.0, %v2666
  %v2668 = vrcp.pop %v2606
  %v2669 = vmul.f32 1.0, %v2668
  %v2670 = vrcp.pop %v2607
  %v2671 = vmul.f32 1.0, %v2670
  %v2672 = vrcp.pop %v2608
  %v2673 = vmul.f32 1.0, %v2672
  %v2674 = vrcp.pop %v2609
  %v2675 = vmul.f32 1.0, %v2674
  %v2676 = vrcp.pop %v2610
  %v2677 = vmul.f32 1.0, %v2676
  %v2678 = vrcp.pop %v2611
  %v2679 = vmul.f32 1.0, %v2678
  %v2680 = vrcp.pop %v2612
  %v2681 = vmul.f32 1.0, %v2680
  %v2682 = vrcp.pop %v2613
  %v2683 = vmul.f32 1.0, %v2682
  %v2684 = vrcp.pop %v2614
  %v2685 = vmul.f32 1.0, %v2684
  %v2686 = vrcp.pop %v2615
  %v2687 = vmul.f32 1.0, %v2686
  %v2688 = vrcp.pop %v2616
  %v2689 = vmul.f32 1.0, %v2688
  %v2690 = vrcp.pop %v2617
  %v2691 = vmul.f32 1.0, %v2690
  %v2692 = vrcp.pop %v2618
  %v2693 = vmul.f32 1.0, %v2692
  %v2694 = vrcp.pop %v2619
  %v2695 = vmul.f32 1.0, %v2694
  %vm2696 = vcmask 7168
  %2697 = vst.msk [vmem:[%s12] sm:$0xff] %vm2696, %v2621
  %2698 = vst.msk [vmem:[%s12 + $0x8] sm:$0xff] %vm2696, %v2623
  %2699 = vst.msk [vmem:[%s12 + $0x10] sm:$0xff] %vm2696, %v2625
  %2700 = vst.msk [vmem:[%s12 + $0x18] sm:$0xff] %vm2696, %v2627
  %2701 = vst.msk [vmem:[%s12 + $0x20] sm:$0xff] %vm2696, %v2629
  %2702 = vst.msk [vmem:[%s12 + $0x28] sm:$0xff] %vm2696, %v2631
  %2703 = vst.msk [vmem:[%s12 + $0x30] sm:$0xff] %vm2696, %v2633
  %2704 = vst.msk [vmem:[%s12 + $0x38] sm:$0xff] %vm2696, %v2635
  %2705 = vst.msk [vmem:[%s12 + $0x40] sm:$0xff] %vm2696, %v2637
  %2706 = vst.msk [vmem:[%s12 + $0x48] sm:$0xff] %vm2696, %v2639
  %2707 = vst.msk [vmem:[%s12 + $0x50] sm:$0xff] %vm2696, %v2641
  %2708 = vst.msk [vmem:[%s12 + $0x58] sm:$0xff] %vm2696, %v2643
  %2709 = vst.msk [vmem:[%s12 + $0x60] sm:$0xff] %vm2696, %v2645
  %2710 = vst.msk [vmem:[%s12 + $0x68] sm:$0xff] %vm2696, %v2647
  %2711 = vst.msk [vmem:[%s12 + $0x70] sm:$0xff] %vm2696, %v2649
  %2712 = vst.msk [vmem:[%s12 + $0x78] sm:$0xff] %vm2696, %v2651
  %2713 = vst.msk [vmem:[%s12 + $0x80] sm:$0xff] %vm2696, %v2653
  %2714 = vst.msk [vmem:[%s12 + $0x88] sm:$0xff] %vm2696, %v2655
  %2715 = vst.msk [vmem:[%s12 + $0x90] sm:$0xff] %vm2696, %v2657
  %2716 = vst.msk [vmem:[%s12 + $0x98] sm:$0xff] %vm2696, %v2659
  %2717 = vst.msk [vmem:[%s12 + $0xa0] sm:$0xff] %vm2696, %v2661
  %2718 = vst.msk [vmem:[%s12 + $0xa8] sm:$0xff] %vm2696, %v2663
  %2719 = vst.msk [vmem:[%s12 + $0xb0] sm:$0xff] %vm2696, %v2665
  %2720 = vst.msk [vmem:[%s12 + $0xb8] sm:$0xff] %vm2696, %v2667
  %2721 = vst.msk [vmem:[%s12 + $0xc0] sm:$0xff] %vm2696, %v2669
  %2722 = vst.msk [vmem:[%s12 + $0xc8] sm:$0xff] %vm2696, %v2671
  %2723 = vst.msk [vmem:[%s12 + $0xd0] sm:$0xff] %vm2696, %v2673
  %2724 = vst.msk [vmem:[%s12 + $0xd8] sm:$0xff] %vm2696, %v2675
  %2725 = vst.msk [vmem:[%s12 + $0xe0] sm:$0xff] %vm2696, %v2677
  %2726 = vst.msk [vmem:[%s12 + $0xe8] sm:$0xff] %vm2696, %v2679
  %2727 = vst.msk [vmem:[%s12 + $0xf0] sm:$0xff] %vm2696, %v2681
  %2728 = vst.msk [vmem:[%s12 + $0xf8] sm:$0xff] %vm2696, %v2683
  %2729 = vst.msk [vmem:[%s12 + $0x100] sm:$0xff] %vm2696, %v2685
  %2730 = vst.msk [vmem:[%s12 + $0x108] sm:$0xff] %vm2696, %v2687
  %2731 = vst.msk [vmem:[%s12 + $0x110] sm:$0xff] %vm2696, %v2689
  %2732 = vst.msk [vmem:[%s12 + $0x118] sm:$0xff] %vm2696, %v2691
  %2733 = vst.msk [vmem:[%s12 + $0x120] sm:$0xff] %vm2696, %v2693
  %2734 = vst.msk [vmem:[%s12 + $0x128] sm:$0xff] %vm2696, %v2695
  // Predicated region
  $region50: #{mlp_forward.1} parent=0 // pred_check
    _
  $region51: #{mlp_forward.1} parent=0 // pred_check_branch
    %2736 = sbr.rel (0) target = $region53
  $region52: #{mlp_forward.1} parent=0 // pred_region
    _
  $region53: #{mlp_forward.1} parent=0 // pred_fallthru
    _
  // Predicated region
  $region54: #{mlp_forward.1} parent=0 // pred_check
    _
  $region55: #{mlp_forward.1} parent=0 // pred_check_branch
    %2738 = sbr.rel (0) target = $region57
  $region56: #{mlp_forward.1} parent=0 // pred_region
    _
  $region57: #{mlp_forward.1} parent=0 // pred_fallthru
    _

</llo_original>
